<compile_context>
chip_gen: v7x
topology: tpu7x:2x2x1
jax: 0.10.0
libtpu: 0.0.40
codegen_flags: <defaults>
</compile_context>

<pallas_src>
import jax
import jax.numpy as jnp
from jax.experimental import pallas as pl
from jax.experimental.pallas import tpu as pltpu


def _round_up(x, m):
    return ((x + m - 1) // m) * m


def _vmem_capacity_bytes():
    """Physical VMEM of the local TPU (64 MiB on v7x, 128 MiB on v5e/v6e)."""
    try:
        return int(pltpu.get_tpu_info().vmem_capacity_bytes)
    except Exception:
        return 64 * 1024 * 1024  # conservative (v7x-sized) fallback


def _vmem_caps():
    """(physical, weight-stream budget, vmem_limit cap) per chip generation."""
    cap = _vmem_capacity_bytes()
    if cap >= 100 * 1024 * 1024:            # v5e / v6e: 128 MiB physical VMEM
        return cap, 72 * 1024 * 1024, 100 * 1024 * 1024
    return cap, 36 * 1024 * 1024, 56 * 1024 * 1024   # v7x: 64 MiB physical VMEM


def _choose_vocab_tile(vocab, k_padded):
    """Largest lane-aligned (pow2 * 128) vocab tile whose double-buffered
    bf16-weight / f32-bias / f32-logits stream fits the per-generation budget,
    capped at the (128-aligned) vocab and preferring >= 2 grid steps so the
    weight stream is actually pipelined."""
    _, budget, _ = _vmem_caps()
    tv = 128
    for cand in (4096, 2048, 1024, 512, 256, 128):
        stream = 2 * (k_padded * cand * 2 + cand * 4 + 8 * cand * 4)
        if stream <= budget:
            tv = cand
            break
    vp128 = _round_up(vocab, 128)
    while tv > 128 and tv > vp128:
        tv //= 2
    while tv > 128 and pl.cdiv(vp128, tv) < 2:
        tv //= 2
    return tv


# --------------------------------------------------------------------------
# Kernel 1: LSTM step + additive attention (runs once, no grid).
# --------------------------------------------------------------------------
def _make_prologue_kernel(num_layers, hidden_size):
    L, H = num_layers, hidden_size

    def kernel(*refs):
        embed_ref, enc_ref, h0_ref, c0_ref = refs[0:4]
        lstm_refs = refs[4:4 + 3 * L]
        wq_ref, wk_ref, v_ref = refs[4 + 3 * L:7 + 3 * L]
        (hc_ref, lstm_out_ref, h_out_ref, c_out_ref,
         attn_w_ref, attn_s_ref) = refs[7 + 3 * L:]

        # ---- single-step multi-layer LSTM: bf16 weights, f32 state & gates ----
        inp = embed_ref[...].astype(jnp.bfloat16)                 # (B, E)
        h_last = None
        for l in range(L):                                        # static unroll
            wih = lstm_refs[3 * l][...]                           # (in, 4H) bf16
            whh = lstm_refs[3 * l + 1][...]                       # (H, 4H) bf16
            b = lstm_refs[3 * l + 2][...]                         # (1, 4H) f32 fused bias
            h_prev = h0_ref[l]                                    # (B, H) f32
            c_prev = c0_ref[l]
            gates = (jnp.dot(inp, wih, preferred_element_type=jnp.float32)
                     + jnp.dot(h_prev.astype(jnp.bfloat16), whh,
                               preferred_element_type=jnp.float32)
                     + b)                                         # (B, 4H) f32
            # TODO(synk): gate boundaries are not 128-aligned for small H; this
            # runs once per step so the lane-slice relayout cost is negligible.
            i_g = jax.nn.sigmoid(gates[:, 0:H])
            f_g = jax.nn.sigmoid(gates[:, H:2 * H])
            g_g = jnp.tanh(gates[:, 2 * H:3 * H])
            o_g = jax.nn.sigmoid(gates[:, 3 * H:4 * H])
            c_new = f_g * c_prev + i_g * g_g
            h_new = o_g * jnp.tanh(c_new)
            h_out_ref[l, :, :] = h_new
            c_out_ref[l, :, :] = c_new
            inp = h_new.astype(jnp.bfloat16)
            h_last = h_new
            # TODO(synk): inter-layer LSTM dropout is train-mode only; omitted.

        # lstm_output for seq_len == 1 equals final_hidden[-1]
        lstm_out_ref[...] = h_last                                # (B, H)

        # ---- additive (Bahdanau) attention over encoder outputs ----
        enc = enc_ref[...]                                        # (B, S, 2H) bf16
        B, S, K = enc.shape
        P = wq_ref.shape[1]
        qp = jnp.dot(h_last.astype(jnp.bfloat16), wq_ref[...],
                     preferred_element_type=jnp.float32)          # (B, P)
        kp = jnp.dot(enc.reshape(B * S, K), wk_ref[...],
                     preferred_element_type=jnp.float32).reshape(B, S, P)
        v_row = v_ref[...].astype(jnp.float32).reshape(1, 1, P)
        e = jnp.tanh(kp + qp[:, None, :])                         # (B, S, P) f32
        scores = jnp.sum(e * v_row, axis=-1)                      # (B, S) f32
        attn_s_ref[...] = scores
        mx = jnp.max(scores, axis=-1, keepdims=True)
        ex = jnp.exp(scores - mx)
        w = ex / jnp.sum(ex, axis=-1, keepdims=True)              # (B, S) f32
        attn_w_ref[...] = w
        # context on the MXU (bf16 x bf16, f32 accumulate)
        ctx = jnp.einsum('bqs,bsk->bqk', w[:, None, :].astype(jnp.bfloat16), enc,
                         preferred_element_type=jnp.float32).reshape(B, K)

        # fused projection input [h_last | context]; cast to bf16 once here so
        # the hot vocab loop never re-packs it.
        hc_ref[...] = jnp.concatenate([h_last, ctx], axis=-1).astype(jnp.bfloat16)

    return kernel


# --------------------------------------------------------------------------
# Kernel 2: streamed output projection over vocab tiles ("parallel" grid).
# --------------------------------------------------------------------------
def _proj_kernel(hc_ref, w_ref, b_ref, out_ref):
    # (Bp, Kp) bf16 @ (Kp, TV) bf16 -> f32, + bias.  One tile per grid step.
    out_ref[...] = (jnp.dot(hc_ref[...], w_ref[...],
                            preferred_element_type=jnp.float32) + b_ref[...])
    # TODO(synk): w_out could be int8 (v5e/v6e) / fp8 (v7x) with per-column
    # scales to halve the HBM weight stream; kept bf16 for numerical fidelity.


def init_params(key, output_size, embed_size, hidden_size, num_layers, proj_size):
    scale = 0.1
    keys = jax.random.split(key, 2 + num_layers)
    p = {}
    p['embedding'] = (jax.random.normal(keys[0], (output_size, embed_size))
                      * scale).astype(jnp.float32)

    lstm = []
    for l in range(num_layers):
        in_dim = embed_size if l == 0 else hidden_size
        k0, k1, k2, k3 = jax.random.split(keys[1 + l], 4)
        wih = (jax.random.normal(k0, (in_dim, 4 * hidden_size)) * scale).astype(jnp.bfloat16)
        whh = (jax.random.normal(k1, (hidden_size, 4 * hidden_size)) * scale).astype(jnp.bfloat16)
        bih = jax.random.normal(k2, (1, 4 * hidden_size)) * scale
        bhh = jax.random.normal(k3, (1, 4 * hidden_size)) * scale
        lstm.append((wih, whh, (bih + bhh).astype(jnp.float32)))   # biases pre-fused
    p['lstm'] = lstm

    ka, kb, kc, kd, ke = jax.random.split(keys[1 + num_layers], 5)
    p['w_q'] = (jax.random.normal(ka, (hidden_size, proj_size)) * scale).astype(jnp.bfloat16)
    p['w_k'] = (jax.random.normal(kb, (2 * hidden_size, proj_size)) * scale).astype(jnp.bfloat16)
    p['v'] = (jax.random.normal(kc, (1, proj_size)) * scale).astype(jnp.bfloat16)

    # Output projection stored pre-padded (one-time, host/init side):
    #   K = 3H rows  -> multiple of 128 (MXU / lane alignment),
    #   V columns    -> multiple of the streamed vocab tile (grid divides evenly).
    k_dim = 3 * hidden_size
    k_pad = _round_up(k_dim, 128)
    tv = _choose_vocab_tile(output_size, k_pad)
    v_pad = _round_up(output_size, tv)
    w_out = jax.random.normal(kd, (k_dim, output_size)) * scale
    b_out = jax.random.normal(ke, (1, output_size)) * scale
    p['w_out'] = jnp.pad(w_out, ((0, k_pad - k_dim),
                                 (0, v_pad - output_size))).astype(jnp.bfloat16)
    p['b_out'] = jnp.pad(b_out, ((0, 0), (0, v_pad - output_size))).astype(jnp.float32)
    return p


def decoder_forward(params, input_ids, enc_outputs, dec_last_hidden, dec_last_cell):
    """Mirrors Decoder.forward with enc_prev_attn_scores=None (additive attention,
    no self/dec/intra-temporal attention, eval-mode dropout)."""
    B = input_ids.shape[0]
    L, _, H = dec_last_hidden.shape
    S = enc_outputs.shape[1]
    E = params['embedding'].shape[1]
    V = params['embedding'].shape[0]            # true (unpadded) vocab size
    Kp, Vp = params['w_out'].shape              # padded projection dims
    K = 3 * H
    Bp = _round_up(B, 8)                        # sublane-aligned batch for projection

    _, _, limit_cap = _vmem_caps()

    # ---- glue: embedding gather (+ eval-mode Dropout == identity) ----
    embed = jnp.take(params['embedding'], input_ids[:, 0], axis=0).astype(jnp.float32)
    # TODO(synk): nn.Dropout(p=0.2) omitted — eval-mode identity.

    lstm_flat = []
    for (wih, whh, b) in params['lstm']:
        lstm_flat += [wih, whh, b]

    # ---------------- kernel 1: LSTM step + additive attention ----------------
    pro_out_shape = (
        jax.ShapeDtypeStruct((B, K), jnp.bfloat16),     # hc = [h_last | context]
        jax.ShapeDtypeStruct((B, H), jnp.float32),      # lstm_output (seq squeezed)
        jax.ShapeDtypeStruct((L, B, H), jnp.float32),   # final_hidden
        jax.ShapeDtypeStruct((L, B, H), jnp.float32),   # final_cell
        jax.ShapeDtypeStruct((B, S), jnp.float32),      # enc_attn_weights
        jax.ShapeDtypeStruct((B, S), jnp.float32),      # enc_attn_scores
    )
    pro_bytes = (B * E * 4 + B * S * 2 * H * 2 + 4 * L * B * H * 4
                 + sum(int(w.size) * w.dtype.itemsize for w in lstm_flat)
                 + int(params['w_q'].size) * 2 + int(params['w_k'].size) * 2
                 + int(params['v'].size) * 2
                 + B * K * 2 + B * H * 4 + 2 * B * S * 4)
    pro_vmem = int(min(max(2 * pro_bytes + (1 << 20), 16 << 20), limit_cap))

    hc, lstm_out, h_n, c_n, attn_w, attn_s = pl.pallas_call(
        _make_prologue_kernel(L, H),
        out_shape=pro_out_shape,
        # Recurrent state updated in place: h0 -> final_hidden, c0 -> final_cell.
        input_output_aliases={2: 2, 3: 3},
        compiler_params=pltpu.CompilerParams(vmem_limit_bytes=pro_vmem),
    )(embed,
      enc_outputs.astype(jnp.bfloat16),                 # bf16 end-to-end enc read
      dec_last_hidden.astype(jnp.float32),
      dec_last_cell.astype(jnp.float32),
      *lstm_flat,
      params['w_q'], params['w_k'], params['v'])

    # Pad hc to the (sublane, lane)-aligned (Bp, Kp) slab once (tiny XLA op).
    hc_p = jnp.pad(hc, ((0, Bp - B), (0, Kp - K)))

    # ------------- kernel 2: streamed output projection over vocab -------------
    TV = _choose_vocab_tile(V, Kp)
    while Vp % TV:             # safety if params were padded on a different chip
        TV //= 2
    NV = Vp // TV

    proj_bytes = (2 * (Kp * TV * 2 + TV * 4 + Bp * TV * 4)   # double-buffered stream
                  + 2 * Bp * Kp * 2)                          # resident hc
    proj_vmem = int(min(max(2 * proj_bytes, 16 << 20), limit_cap))

    # TODO(synk): on v5e a profile may justify pipeline_mode=pl.Buffered(3) on the
    # w_out/b_out specs (longer per-tile weight DMA); default 2-deep kept here.
    logits_p = pl.pallas_call(
        _proj_kernel,
        out_shape=jax.ShapeDtypeStruct((Bp, Vp), jnp.float32),
        grid=(NV,),
        in_specs=[
            pl.BlockSpec((Bp, Kp), lambda j: (0, 0)),   # hc: constant block, DMA'd once
            pl.BlockSpec((Kp, TV), lambda j: (0, j)),   # streamed w_out tiles (bf16)
            pl.BlockSpec((1, TV), lambda j: (0, j)),    # streamed b_out tiles (f32)
        ],
        out_specs=pl.BlockSpec((Bp, TV), lambda j: (0, j)),
        compiler_params=pltpu.CompilerParams(
            # Independent vocab tiles: lets v7x split the HBM-bound weight
            # stream across both TensorCores; harmless on v5e/v6e.
            dimension_semantics=("parallel",),
            vmem_limit_bytes=proj_vmem),
    )(hc_p, params['w_out'], params['b_out'])

    # Tiny wrapper op finishing log_softmax over the true vocab (the B*V re-read
    # is negligible vs. the 3H*V bf16 weight stream and enables the parallel axis).
    log_probs = jax.nn.log_softmax(logits_p[:B, :V], axis=-1)

    return (log_probs, lstm_out.reshape(B, 1, H), (h_n, c_n), attn_w, attn_s)


if __name__ == "__main__":
    # Small, forward-consistent shapes (vocab a multiple of 128 so the
    # projection is exercised with >= 2 streamed tiles).
    OUTPUT_SIZE = 512   # vocab
    EMBED_SIZE = 16
    HIDDEN_SIZE = 32
    NUM_LAYERS = 2
    PROJ_SIZE = 128     # module default proj_size
    B = 2
    S = 8               # encoder source length

    key = jax.random.PRNGKey(0)
    kp_, k1, k2, k3 = jax.random.split(key, 4)

    params = init_params(kp_, OUTPUT_SIZE, EMBED_SIZE, HIDDEN_SIZE,
                         NUM_LAYERS, PROJ_SIZE)

    input_ids = jax.random.randint(k1, (B, 1), 0, OUTPUT_SIZE)                 # token ids
    enc_outputs = jax.random.normal(k2, (B, S, 2 * HIDDEN_SIZE), jnp.float32)  # (B, S, 2H)
    dec_last_hidden = jax.random.normal(
        k3, (NUM_LAYERS, B, HIDDEN_SIZE), jnp.float32) * 0.1
    dec_last_cell = jnp.zeros((NUM_LAYERS, B, HIDDEN_SIZE), jnp.float32)

    fwd = jax.jit(decoder_forward)
    out = fwd(params, input_ids, enc_outputs, dec_last_hidden, dec_last_cell)
    log_probs, lstm_output, (final_h, final_c), attn_w, attn_s = out
    jax.block_until_ready(log_probs)
    jax.block_until_ready(final_h)

    assert log_probs.shape == (B, OUTPUT_SIZE)
    assert lstm_output.shape == (B, 1, HIDDEN_SIZE)
    assert final_h.shape == (NUM_LAYERS, B, HIDDEN_SIZE)
    assert final_c.shape == (NUM_LAYERS, B, HIDDEN_SIZE)
    assert attn_w.shape == (B, S)
    assert attn_s.shape == (B, S)
    # log_softmax rows must sum to ~1 in prob space; attention rows likewise.
    assert jnp.allclose(jnp.sum(jnp.exp(log_probs), axis=1), 1.0, atol=1e-4)
    assert jnp.allclose(jnp.sum(attn_w, axis=1), 1.0, atol=1e-4)
    assert bool(jnp.all(jnp.isfinite(log_probs)))
    assert bool(jnp.all(jnp.isfinite(final_h))) and bool(jnp.all(jnp.isfinite(final_c)))
    print("KERNEL_OK")
</pallas_src>

<mosaic_0001>
module attributes {stable_mosaic.version = 11 : i64} {
  func.func @_proj_kernel(%arg0: i32, %arg1: memref<8x128xbf16, #tpu.memory_space<vmem>>, %arg2: memref<128x256xbf16, #tpu.memory_space<vmem>>, %arg3: memref<1x256xf32, #tpu.memory_space<vmem>>, %arg4: memref<8x256xf32, #tpu.memory_space<vmem>>) attributes {dimension_semantics = [#tpu.dimension_semantics<parallel>], iteration_bounds = array<i64: 2>, scalar_prefetch = 0 : i64, scratch_operands = 0 : i64, tpu.core_type = #tpu.core_type<tc>, window_params = [{pipeline_mode = #tpu.pipeline_mode<synchronous>, transform_indices = @transform_0, window_bounds = array<i64: 8, 128>}, {transform_indices = @transform_1, window_bounds = array<i64: 128, 256>}, {transform_indices = @transform_2, window_bounds = array<i64: 1, 256>}, {transform_indices = @transform_3, window_bounds = array<i64: 8, 256>}]} {
    %c0 = arith.constant 0 : index
    %c0_0 = arith.constant 0 : index
    %0 = vector.load %arg1[%c0, %c0_0] : memref<8x128xbf16, #tpu.memory_space<vmem>>, vector<8x128xbf16>
    %c0_1 = arith.constant 0 : index
    %c0_2 = arith.constant 0 : index
    %1 = vector.load %arg2[%c0_1, %c0_2] : memref<128x256xbf16, #tpu.memory_space<vmem>>, vector<128x256xbf16>
    %cst = arith.constant dense<0.000000e+00> : vector<8x256xf32>
    %2 = tpu.matmul %0, %1, %cst {dimension_numbers = #tpu.dot_dimension_numbers<[1], [0], [0], [1], [0, 0, 1, 1], [], []>} : vector<8x128xbf16>, vector<128x256xbf16>, vector<8x256xf32> -> vector<8x256xf32>
    %c0_3 = arith.constant 0 : index
    %c0_4 = arith.constant 0 : index
    %3 = vector.load %arg3[%c0_3, %c0_4] : memref<1x256xf32, #tpu.memory_space<vmem>>, vector<1x256xf32>
    %4 = vector.broadcast %3 : vector<1x256xf32> to vector<8x256xf32>
    %5 = arith.addf %2, %4 : vector<8x256xf32>
    %c0_5 = arith.constant 0 : index
    %c0_6 = arith.constant 0 : index
    %6 = vector.load %arg4[%c0_5, %c0_6] : memref<8x256xf32, #tpu.memory_space<vmem>>, vector<8x256xf32>
    tpu.vector_store %arg4[%c0_5, %c0_6], %5 {strides = array<i32>} : memref<8x256xf32, #tpu.memory_space<vmem>>, vector<8x256xf32>,
    return
  }
  func.func @transform_0(%arg0: i32) -> (i32, i32) {
    %c0_i32 = arith.constant 0 : i32
    %c0_i32_0 = arith.constant 0 : i32
    %c0_i32_1 = arith.constant 0 : i32
    return %c0_i32, %c0_i32_0 : i32, i32
  }
  func.func @transform_1(%arg0: i32) -> (i32, i32) {
    %c0_i32 = arith.constant 0 : i32
    %c0_i32_0 = arith.constant 0 : i32
    return %c0_i32, %arg0 : i32, i32
  }
  func.func @transform_2(%arg0: i32) -> (i32, i32) {
    %c0_i32 = arith.constant 0 : i32
    %c0_i32_0 = arith.constant 0 : i32
    return %c0_i32, %arg0 : i32, i32
  }
  func.func @transform_3(%arg0: i32) -> (i32, i32) {
    %c0_i32 = arith.constant 0 : i32
    %c0_i32_0 = arith.constant 0 : i32
    return %c0_i32, %arg0 : i32, i32
  }
}

module attributes {stable_mosaic.version = 11 : i64} {
  func.func @kernel(%arg0: memref<2x16xf32, #tpu.memory_space<vmem>>, %arg1: memref<2x8x64xbf16, #tpu.memory_space<vmem>>, %arg2: memref<2x2x32xf32, #tpu.memory_space<vmem>>, %arg3: memref<2x2x32xf32, #tpu.memory_space<vmem>>, %arg4: memref<16x128xbf16, #tpu.memory_space<vmem>>, %arg5: memref<32x128xbf16, #tpu.memory_space<vmem>>, %arg6: memref<1x128xf32, #tpu.memory_space<vmem>>, %arg7: memref<32x128xbf16, #tpu.memory_space<vmem>>, %arg8: memref<32x128xbf16, #tpu.memory_space<vmem>>, %arg9: memref<1x128xf32, #tpu.memory_space<vmem>>, %arg10: memref<32x128xbf16, #tpu.memory_space<vmem>>, %arg11: memref<64x128xbf16, #tpu.memory_space<vmem>>, %arg12: memref<1x128xbf16, #tpu.memory_space<vmem>>, %arg13: memref<2x96xbf16, #tpu.memory_space<vmem>>, %arg14: memref<2x32xf32, #tpu.memory_space<vmem>>, %arg15: memref<2x2x32xf32, #tpu.memory_space<vmem>>, %arg16: memref<2x2x32xf32, #tpu.memory_space<vmem>>, %arg17: memref<2x8xf32, #tpu.memory_space<vmem>>, %arg18: memref<2x8xf32, #tpu.memory_space<vmem>>) attributes {dimension_semantics = [], scalar_prefetch = 0 : i64, scratch_operands = 0 : i64, tpu.core_type = #tpu.core_type<tc>} {
    %c0 = arith.constant 0 : index
    %c0_0 = arith.constant 0 : index
    %0 = vector.load %arg0[%c0, %c0_0] : memref<2x16xf32, #tpu.memory_space<vmem>>, vector<2x16xf32>
    %1 = arith.truncf %0 : vector<2x16xf32> to vector<2x16xbf16>
    %c0_1 = arith.constant 0 : index
    %c0_2 = arith.constant 0 : index
    %2 = vector.load %arg4[%c0_1, %c0_2] : memref<16x128xbf16, #tpu.memory_space<vmem>>, vector<16x128xbf16>
    %c0_3 = arith.constant 0 : index
    %c0_4 = arith.constant 0 : index
    %3 = vector.load %arg5[%c0_3, %c0_4] : memref<32x128xbf16, #tpu.memory_space<vmem>>, vector<32x128xbf16>
    %c0_5 = arith.constant 0 : index
    %c0_6 = arith.constant 0 : index
    %4 = vector.load %arg6[%c0_5, %c0_6] : memref<1x128xf32, #tpu.memory_space<vmem>>, vector<1x128xf32>
    %c0_7 = arith.constant 0 : index
    %c0_8 = arith.constant 0 : index
    %c0_9 = arith.constant 0 : index
    %5 = vector.load %arg2[%c0_7, %c0_8, %c0_9] : memref<2x2x32xf32, #tpu.memory_space<vmem>>, vector<1x2x32xf32>
    %6 = vector.shape_cast %5 : vector<1x2x32xf32> to vector<2x32xf32>
    %c0_10 = arith.constant 0 : index
    %c0_11 = arith.constant 0 : index
    %c0_12 = arith.constant 0 : index
    %7 = vector.load %arg3[%c0_10, %c0_11, %c0_12] : memref<2x2x32xf32, #tpu.memory_space<vmem>>, vector<1x2x32xf32>
    %8 = vector.shape_cast %7 : vector<1x2x32xf32> to vector<2x32xf32>
    %cst = arith.constant dense<0.000000e+00> : vector<2x128xf32>
    %9 = tpu.matmul %1, %2, %cst {dimension_numbers = #tpu.dot_dimension_numbers<[1], [0], [0], [1], [0, 0, 1, 1], [], []>} : vector<2x16xbf16>, vector<16x128xbf16>, vector<2x128xf32> -> vector<2x128xf32>
    %10 = arith.truncf %6 : vector<2x32xf32> to vector<2x32xbf16>
    %cst_13 = arith.constant dense<0.000000e+00> : vector<2x128xf32>
    %11 = tpu.matmul %10, %3, %cst_13 {dimension_numbers = #tpu.dot_dimension_numbers<[1], [0], [0], [1], [0, 0, 1, 1], [], []>} : vector<2x32xbf16>, vector<32x128xbf16>, vector<2x128xf32> -> vector<2x128xf32>
    %12 = arith.addf %9, %11 : vector<2x128xf32>
    %13 = vector.broadcast %4 : vector<1x128xf32> to vector<2x128xf32>
    %14 = arith.addf %12, %13 : vector<2x128xf32>
    %15 = vector.extract_strided_slice %14 {offsets = [0, 0], sizes = [2, 32], strides = [1, 1]} : vector<2x128xf32> to vector<2x32xf32>
    %16 = arith.negf %15 : vector<2x32xf32>
    %17 = math.exp %16 : vector<2x32xf32>
    %cst_14 = arith.constant 1.000000e+00 : f32
    %18 = vector.broadcast %cst_14 : f32 to vector<2x32xf32>
    %19 = arith.addf %18, %17 : vector<2x32xf32>
    %20 = arith.divf %18, %19 : vector<2x32xf32>
    %21 = vector.extract_strided_slice %14 {offsets = [0, 32], sizes = [2, 32], strides = [1, 1]} : vector<2x128xf32> to vector<2x32xf32>
    %22 = arith.negf %21 : vector<2x32xf32>
    %23 = math.exp %22 : vector<2x32xf32>
    %cst_15 = arith.constant 1.000000e+00 : f32
    %24 = vector.broadcast %cst_15 : f32 to vector<2x32xf32>
    %25 = arith.addf %24, %23 : vector<2x32xf32>
    %26 = arith.divf %24, %25 : vector<2x32xf32>
    %27 = vector.extract_strided_slice %14 {offsets = [0, 64], sizes = [2, 32], strides = [1, 1]} : vector<2x128xf32> to vector<2x32xf32>
    %28 = math.tanh %27 : vector<2x32xf32>
    %29 = vector.extract_strided_slice %14 {offsets = [0, 96], sizes = [2, 32], strides = [1, 1]} : vector<2x128xf32> to vector<2x32xf32>
    %30 = arith.negf %29 : vector<2x32xf32>
    %31 = math.exp %30 : vector<2x32xf32>
    %cst_16 = arith.constant 1.000000e+00 : f32
    %32 = vector.broadcast %cst_16 : f32 to vector<2x32xf32>
    %33 = arith.addf %32, %31 : vector<2x32xf32>
    %34 = arith.divf %32, %33 : vector<2x32xf32>
    %35 = arith.mulf %26, %8 : vector<2x32xf32>
    %36 = arith.mulf %20, %28 : vector<2x32xf32>
    %37 = arith.addf %35, %36 : vector<2x32xf32>
    %38 = math.tanh %37 : vector<2x32xf32>
    %39 = arith.mulf %34, %38 : vector<2x32xf32>
    %c0_17 = arith.constant 0 : index
    %c0_18 = arith.constant 0 : index
    %c0_19 = arith.constant 0 : index
    %40 = vector.load %arg15[%c0_17, %c0_18, %c0_19] : memref<2x2x32xf32, #tpu.memory_space<vmem>>, vector<1x2x32xf32>
    %41 = vector.shape_cast %40 : vector<1x2x32xf32> to vector<2x32xf32>
    %42 = vector.shape_cast %39 : vector<2x32xf32> to vector<1x2x32xf32>
    tpu.vector_store %arg15[%c0_17, %c0_18, %c0_19], %42 {strides = array<i32>} : memref<2x2x32xf32, #tpu.memory_space<vmem>>, vector<1x2x32xf32>,
    %c0_20 = arith.constant 0 : index
    %c0_21 = arith.constant 0 : index
    %c0_22 = arith.constant 0 : index
    %43 = vector.load %arg16[%c0_20, %c0_21, %c0_22] : memref<2x2x32xf32, #tpu.memory_space<vmem>>, vector<1x2x32xf32>
    %44 = vector.shape_cast %43 : vector<1x2x32xf32> to vector<2x32xf32>
    %45 = vector.shape_cast %37 : vector<2x32xf32> to vector<1x2x32xf32>
    tpu.vector_store %arg16[%c0_20, %c0_21, %c0_22], %45 {strides = array<i32>} : memref<2x2x32xf32, #tpu.memory_space<vmem>>, vector<1x2x32xf32>,
    %46 = arith.truncf %39 : vector<2x32xf32> to vector<2x32xbf16>
    %c0_23 = arith.constant 0 : index
    %c0_24 = arith.constant 0 : index
    %47 = vector.load %arg7[%c0_23, %c0_24] : memref<32x128xbf16, #tpu.memory_space<vmem>>, vector<32x128xbf16>
    %c0_25 = arith.constant 0 : index
    %c0_26 = arith.constant 0 : index
    %48 = vector.load %arg8[%c0_25, %c0_26] : memref<32x128xbf16, #tpu.memory_space<vmem>>, vector<32x128xbf16>
    %c0_27 = arith.constant 0 : index
    %c0_28 = arith.constant 0 : index
    %49 = vector.load %arg9[%c0_27, %c0_28] : memref<1x128xf32, #tpu.memory_space<vmem>>, vector<1x128xf32>
    %c1 = arith.constant 1 : index
    %c0_29 = arith.constant 0 : index
    %c0_30 = arith.constant 0 : index
    %50 = vector.load %arg2[%c1, %c0_29, %c0_30] : memref<2x2x32xf32, #tpu.memory_space<vmem>>, vector<1x2x32xf32>
    %51 = vector.shape_cast %50 : vector<1x2x32xf32> to vector<2x32xf32>
    %c1_31 = arith.constant 1 : index
    %c0_32 = arith.constant 0 : index
    %c0_33 = arith.constant 0 : index
    %52 = vector.load %arg3[%c1_31, %c0_32, %c0_33] : memref<2x2x32xf32, #tpu.memory_space<vmem>>, vector<1x2x32xf32>
    %53 = vector.shape_cast %52 : vector<1x2x32xf32> to vector<2x32xf32>
    %cst_34 = arith.constant dense<0.000000e+00> : vector<2x128xf32>
    %54 = tpu.matmul %46, %47, %cst_34 {dimension_numbers = #tpu.dot_dimension_numbers<[1], [0], [0], [1], [0, 0, 1, 1], [], []>} : vector<2x32xbf16>, vector<32x128xbf16>, vector<2x128xf32> -> vector<2x128xf32>
    %55 = arith.truncf %51 : vector<2x32xf32> to vector<2x32xbf16>
    %cst_35 = arith.constant dense<0.000000e+00> : vector<2x128xf32>
    %56 = tpu.matmul %55, %48, %cst_35 {dimension_numbers = #tpu.dot_dimension_numbers<[1], [0], [0], [1], [0, 0, 1, 1], [], []>} : vector<2x32xbf16>, vector<32x128xbf16>, vector<2x128xf32> -> vector<2x128xf32>
    %57 = arith.addf %54, %56 : vector<2x128xf32>
    %58 = vector.broadcast %49 : vector<1x128xf32> to vector<2x128xf32>
    %59 = arith.addf %57, %58 : vector<2x128xf32>
    %60 = vector.extract_strided_slice %59 {offsets = [0, 0], sizes = [2, 32], strides = [1, 1]} : vector<2x128xf32> to vector<2x32xf32>
    %61 = arith.negf %60 : vector<2x32xf32>
    %62 = math.exp %61 : vector<2x32xf32>
    %cst_36 = arith.constant 1.000000e+00 : f32
    %63 = vector.broadcast %cst_36 : f32 to vector<2x32xf32>
    %64 = arith.addf %63, %62 : vector<2x32xf32>
    %65 = arith.divf %63, %64 : vector<2x32xf32>
    %66 = vector.extract_strided_slice %59 {offsets = [0, 32], sizes = [2, 32], strides = [1, 1]} : vector<2x128xf32> to vector<2x32xf32>
    %67 = arith.negf %66 : vector<2x32xf32>
    %68 = math.exp %67 : vector<2x32xf32>
    %cst_37 = arith.constant 1.000000e+00 : f32
    %69 = vector.broadcast %cst_37 : f32 to vector<2x32xf32>
    %70 = arith.addf %69, %68 : vector<2x32xf32>
    %71 = arith.divf %69, %70 : vector<2x32xf32>
    %72 = vector.extract_strided_slice %59 {offsets = [0, 64], sizes = [2, 32], strides = [1, 1]} : vector<2x128xf32> to vector<2x32xf32>
    %73 = math.tanh %72 : vector<2x32xf32>
    %74 = vector.extract_strided_slice %59 {offsets = [0, 96], sizes = [2, 32], strides = [1, 1]} : vector<2x128xf32> to vector<2x32xf32>
    %75 = arith.negf %74 : vector<2x32xf32>
    %76 = math.exp %75 : vector<2x32xf32>
    %cst_38 = arith.constant 1.000000e+00 : f32
    %77 = vector.broadcast %cst_38 : f32 to vector<2x32xf32>
    %78 = arith.addf %77, %76 : vector<2x32xf32>
    %79 = arith.divf %77, %78 : vector<2x32xf32>
    %80 = arith.mulf %71, %53 : vector<2x32xf32>
    %81 = arith.mulf %65, %73 : vector<2x32xf32>
    %82 = arith.addf %80, %81 : vector<2x32xf32>
    %83 = math.tanh %82 : vector<2x32xf32>
    %84 = arith.mulf %79, %83 : vector<2x32xf32>
    %c1_39 = arith.constant 1 : index
    %c0_40 = arith.constant 0 : index
    %c0_41 = arith.constant 0 : index
    %85 = vector.load %arg15[%c1_39, %c0_40, %c0_41] : memref<2x2x32xf32, #tpu.memory_space<vmem>>, vector<1x2x32xf32>
    %86 = vector.shape_cast %85 : vector<1x2x32xf32> to vector<2x32xf32>
    %87 = vector.shape_cast %84 : vector<2x32xf32> to vector<1x2x32xf32>
    tpu.vector_store %arg15[%c1_39, %c0_40, %c0_41], %87 {strides = array<i32>} : memref<2x2x32xf32, #tpu.memory_space<vmem>>, vector<1x2x32xf32>,
    %c1_42 = arith.constant 1 : index
    %c0_43 = arith.constant 0 : index
    %c0_44 = arith.constant 0 : index
    %88 = vector.load %arg16[%c1_42, %c0_43, %c0_44] : memref<2x2x32xf32, #tpu.memory_space<vmem>>, vector<1x2x32xf32>
    %89 = vector.shape_cast %88 : vector<1x2x32xf32> to vector<2x32xf32>
    %90 = vector.shape_cast %82 : vector<2x32xf32> to vector<1x2x32xf32>
    tpu.vector_store %arg16[%c1_42, %c0_43, %c0_44], %90 {strides = array<i32>} : memref<2x2x32xf32, #tpu.memory_space<vmem>>, vector<1x2x32xf32>,
    %c0_45 = arith.constant 0 : index
    %c0_46 = arith.constant 0 : index
    %91 = vector.load %arg14[%c0_45, %c0_46] : memref<2x32xf32, #tpu.memory_space<vmem>>, vector<2x32xf32>
    tpu.vector_store %arg14[%c0_45, %c0_46], %84 {strides = array<i32>} : memref<2x32xf32, #tpu.memory_space<vmem>>, vector<2x32xf32>,
    %c0_47 = arith.constant 0 : index
    %c0_48 = arith.constant 0 : index
    %c0_49 = arith.constant 0 : index
    %92 = vector.load %arg1[%c0_47, %c0_48, %c0_49] : memref<2x8x64xbf16, #tpu.memory_space<vmem>>, vector<2x8x64xbf16>
    %93 = arith.truncf %84 : vector<2x32xf32> to vector<2x32xbf16>
    %c0_50 = arith.constant 0 : index
    %c0_51 = arith.constant 0 : index
    %94 = vector.load %arg10[%c0_50, %c0_51] : memref<32x128xbf16, #tpu.memory_space<vmem>>, vector<32x128xbf16>
    %cst_52 = arith.constant dense<0.000000e+00> : vector<2x128xf32>
    %95 = tpu.matmul %93, %94, %cst_52 {dimension_numbers = #tpu.dot_dimension_numbers<[1], [0], [0], [1], [0, 0, 1, 1], [], []>} : vector<2x32xbf16>, vector<32x128xbf16>, vector<2x128xf32> -> vector<2x128xf32>
    %96 = vector.shape_cast %92 : vector<2x8x64xbf16> to vector<16x64xbf16>
    %c0_53 = arith.constant 0 : index
    %c0_54 = arith.constant 0 : index
    %97 = vector.load %arg11[%c0_53, %c0_54] : memref<64x128xbf16, #tpu.memory_space<vmem>>, vector<64x128xbf16>
    %cst_55 = arith.constant dense<0.000000e+00> : vector<16x128xf32>
    %98 = tpu.matmul %96, %97, %cst_55 {dimension_numbers = #tpu.dot_dimension_numbers<[1], [0], [0], [1], [0, 0, 1, 1], [], []>} : vector<16x64xbf16>, vector<64x128xbf16>, vector<16x128xf32> -> vector<16x128xf32>
    %99 = vector.shape_cast %98 : vector<16x128xf32> to vector<2x8x128xf32>
    %c0_56 = arith.constant 0 : index
    %c0_57 = arith.constant 0 : index
    %100 = vector.load %arg12[%c0_56, %c0_57] : memref<1x128xbf16, #tpu.memory_space<vmem>>, vector<1x128xbf16>
    %101 = arith.extf %100 : vector<1x128xbf16> to vector<1x128xf32>
    %102 = vector.shape_cast %101 : vector<1x128xf32> to vector<1x1x128xf32>
    %103 = vector.shape_cast %95 : vector<2x128xf32> to vector<2x1x128xf32>
    %104 = vector.broadcast %103 : vector<2x1x128xf32> to vector<2x8x128xf32>
    %105 = arith.addf %99, %104 : vector<2x8x128xf32>
    %106 = math.tanh %105 : vector<2x8x128xf32>
    %107 = vector.broadcast %102 : vector<1x1x128xf32> to vector<2x8x128xf32>
    %108 = arith.mulf %106, %107 : vector<2x8x128xf32>
    %cst_58 = arith.constant dense<0.000000e+00> : vector<2x8xf32>
    %109 = vector.multi_reduction <add>, %108, %cst_58 [2] : vector<2x8x128xf32> to vector<2x8xf32>
    %c0_59 = arith.constant 0 : index
    %c0_60 = arith.constant 0 : index
    %110 = vector.load %arg18[%c0_59, %c0_60] : memref<2x8xf32, #tpu.memory_space<vmem>>, vector<2x8xf32>
    tpu.vector_store %arg18[%c0_59, %c0_60], %109 {strides = array<i32>} : memref<2x8xf32, #tpu.memory_space<vmem>>, vector<2x8xf32>,
    %cst_61 = arith.constant dense<0xFF800000> : vector<2xf32>
    %111 = vector.multi_reduction <maximumf>, %109, %cst_61 [1] : vector<2x8xf32> to vector<2xf32>
    %112 = vector.shape_cast %111 : vector<2xf32> to vector<2x1xf32>
    %113 = vector.broadcast %112 : vector<2x1xf32> to vector<2x8xf32>
    %114 = arith.subf %109, %113 : vector<2x8xf32>
    %115 = math.exp %114 : vector<2x8xf32>
    %cst_62 = arith.constant dense<0.000000e+00> : vector<2xf32>
    %116 = vector.multi_reduction <add>, %115, %cst_62 [1] : vector<2x8xf32> to vector<2xf32>
    %117 = vector.shape_cast %116 : vector<2xf32> to vector<2x1xf32>
    %118 = vector.broadcast %117 : vector<2x1xf32> to vector<2x8xf32>
    %119 = arith.divf %115, %118 : vector<2x8xf32>
    %c0_63 = arith.constant 0 : index
    %c0_64 = arith.constant 0 : index
    %120 = vector.load %arg17[%c0_63, %c0_64] : memref<2x8xf32, #tpu.memory_space<vmem>>, vector<2x8xf32>
    tpu.vector_store %arg17[%c0_63, %c0_64], %119 {strides = array<i32>} : memref<2x8xf32, #tpu.memory_space<vmem>>, vector<2x8xf32>,
    %121 = vector.shape_cast %119 : vector<2x8xf32> to vector<2x1x8xf32>
    %122 = arith.truncf %121 : vector<2x1x8xf32> to vector<2x1x8xbf16>
    "tpu.trace_start"() <{level = 10 : i32, message = "bqs,bsk->bqk"}> : () -> ()
    %cst_65 = arith.constant dense<0.000000e+00> : vector<2x1x64xf32>
    %123 = tpu.matmul %122, %92, %cst_65 {dimension_numbers = #tpu.dot_dimension_numbers<[2], [1], [1], [2], [0, 0, 0, 1, 1, 2], [0], [0]>} : vector<2x1x8xbf16>, vector<2x8x64xbf16>, vector<2x1x64xf32> -> vector<2x1x64xf32>
    "tpu.trace_stop"() : () -> ()
    %124 = vector.shape_cast %123 : vector<2x1x64xf32> to vector<2x64xf32>
    %125 = tpu.concatenate %84, %124 in 1 : vector<2x32xf32>, vector<2x64xf32> -> vector<2x96xf32>
    %126 = arith.truncf %125 : vector<2x96xf32> to vector<2x96xbf16>
    %c0_66 = arith.constant 0 : index
    %c0_67 = arith.constant 0 : index
    %127 = vector.load %arg13[%c0_66, %c0_67] : memref<2x96xbf16, #tpu.memory_space<vmem>>, vector<2x96xbf16>
    tpu.vector_store %arg13[%c0_66, %c0_67], %126 {strides = array<i32>} : memref<2x96xbf16, #tpu.memory_space<vmem>>, vector<2x96xbf16>,
    return
  }
}

</mosaic_0001>

<llo_original>
// kernel: decoder_forward.3
$region0: #{decoder_forward.3}
  #allocation0 [shape = 'u32[]', space=smem, size = 0x4, offset = 0x4, fixed_abs, tag = 'smem constant byte address 0x4 - core index']
  #allocation1 [shape = 'u32[144,128]{1,0:T(1,128)}', space=vmem, size = 0x12000, scoped, tag = 'internal scratch']
  %s0 = inlined_call_operand.vmem [shape: bf16[8,128], index: 0, kind: input, shape index: {}]
  %s1 = inlined_call_operand.vmem [shape: bf16[128,512], index: 1, kind: input, shape index: {}]
  %s2 = inlined_call_operand.vmem [shape: f32[1,512], index: 2, kind: input, shape index: {}]
  %s3 = inlined_call_operand.vmem [shape: f32[8,512], index: 3, kind: output, shape index: {}]
  %s4 = sld [smem:[#allocation0]]
  $region83: #{decoder_forward.3} parent=0
    _
  %s6 = ssub.s32 1, %s4
  %s7 = scalar_select 0, %s6, %s4
  $region1: #{decoder_forward.3} parent=0
    #allocation2 [shape = 'u8[131072]{0}', space=vmem, size = 0x20000, scoped, tag = 'input window, operand 1']
    loop: start=0, step=1, limit=4
    $region2: #{decoder_forward.3} parent=1 // loop_pre_header
      _
    $region3: #{decoder_forward.3} parent=1 // loop_header
      %s9 = sphi 0, %s13
      %p10 = scmp.ge.s32.totalorder %s9, 4
      %s17 = sphi 0, %s17
      %s19 = sphi 0, %s17
      %s20 = sphi 0, %s19
      %s34 = sphi 0, %s20
      %s40 = sphi 0, %s42
      %s43 = sphi 0, %s40
      %s44 = sphi 0, %s43
      %s60 = sphi 0, %s44
      %s66 = sphi 0, %s68
      %s69 = sphi 0, %s66
      %s70 = sphi 0, %s69
      %s86 = sphi 0, %s70
      %s92 = sphi 0, %s94
      %s95 = sphi 0, %s92
      %s96 = sphi 0, %s95
      %s112 = sphi 0, %s96
    $region4: #{decoder_forward.3} parent=1 // loop_header_branch
      %12 = sbr.rel (%p10) target = $region8
    $region5: #{decoder_forward.3} parent=1 // loop_body
      %s14 = ssub.s32 %s9, 1
      %s15 = ssub.s32 %s9, 2
      %s16 = sadd.s32 %s9, 1
      %s18 = sadd.s32 %s17, 1
      %p21 = scmp.eq.s32.totalorder %s9, 1
      %p22 = scmp.ne.s32.totalorder %s17, %s19
      %p23 = scmp.eq.s32.totalorder %s9, 0
      %p24 = por %p22, %p23
      %p25 = scmp.ne.s32.totalorder %s17, %s19
      %p26 = scmp.eq.s32.totalorder %s14, 1
      %p27 = por %p25, %p26
      %p28 = scmp.ne.s32.totalorder %s19, %s20
      %p29 = scmp.eq.s32.totalorder %s14, 0
      %p30 = por %p28, %p29
      %p31 = scmp.ne.s32.totalorder %s19, %s20
      %p32 = scmp.eq.s32.totalorder %s15, 1
      %p33 = por %p31, %p32
      %p35 = scmp.ne.s32.totalorder %s20, %s34
      %p36 = scmp.eq.s32.totalorder %s15, 0
      %p37 = por %p35, %p36
      %s38 = ssub.s32 %s9, %s16
      %p39 = scmp.eq.s32.totalorder %s38, 0
      %s41 = sadd.s32 %s40, 1
      %s42 = scalar_select %p39, %s40, %s41
      %p45 = pneg %p39
      %p46 = scmp.eq.s32.totalorder %s9, 1
      %p47 = por %p45, %p46
      %p48 = scmp.ne.s32.totalorder %s40, %s43
      %p49 = scmp.eq.s32.totalorder %s9, 0
      %p50 = por %p48, %p49
      %p51 = scmp.ne.s32.totalorder %s40, %s43
      %p52 = scmp.eq.s32.totalorder %s14, 1
      %p53 = por %p51, %p52
      %p54 = scmp.ne.s32.totalorder %s43, %s44
      %p55 = scmp.eq.s32.totalorder %s14, 0
      %p56 = por %p54, %p55
      %p57 = scmp.ne.s32.totalorder %s43, %s44
      %p58 = scmp.eq.s32.totalorder %s15, 1
      %p59 = por %p57, %p58
      %p61 = scmp.ne.s32.totalorder %s44, %s60
      %p62 = scmp.eq.s32.totalorder %s15, 0
      %p63 = por %p61, %p62
      %s64 = ssub.s32 %s9, %s16
      %p65 = scmp.eq.s32.totalorder %s64, 0
      %s67 = sadd.s32 %s66, 1
      %s68 = scalar_select %p65, %s66, %s67
      %p71 = pneg %p65
      %p72 = scmp.eq.s32.totalorder %s9, 1
      %p73 = por %p71, %p72
      %p74 = scmp.ne.s32.totalorder %s66, %s69
      %p75 = scmp.eq.s32.totalorder %s9, 0
      %p76 = por %p74, %p75
      %p77 = scmp.ne.s32.totalorder %s66, %s69
      %p78 = scmp.eq.s32.totalorder %s14, 1
      %p79 = por %p77, %p78
      %p80 = scmp.ne.s32.totalorder %s69, %s70
      %p81 = scmp.eq.s32.totalorder %s14, 0
      %p82 = por %p80, %p81
      %p83 = scmp.ne.s32.totalorder %s69, %s70
      %p84 = scmp.eq.s32.totalorder %s15, 1
      %p85 = por %p83, %p84
      %p87 = scmp.ne.s32.totalorder %s70, %s86
      %p88 = scmp.eq.s32.totalorder %s15, 0
      %p89 = por %p87, %p88
      %s90 = ssub.s32 %s9, %s16
      %p91 = scmp.eq.s32.totalorder %s90, 0
      %s93 = sadd.s32 %s92, 1
      %s94 = scalar_select %p91, %s92, %s93
      %p97 = pneg %p91
      %p98 = scmp.eq.s32.totalorder %s9, 1
      %p99 = por %p97, %p98
      %p100 = scmp.ne.s32.totalorder %s92, %s95
      %p101 = scmp.eq.s32.totalorder %s9, 0
      %p102 = por %p100, %p101
      %p103 = scmp.ne.s32.totalorder %s92, %s95
      %p104 = scmp.eq.s32.totalorder %s14, 1
      %p105 = por %p103, %p104
      %p106 = scmp.ne.s32.totalorder %s95, %s96
      %p107 = scmp.eq.s32.totalorder %s14, 0
      %p108 = por %p106, %p107
      %p109 = scmp.ne.s32.totalorder %s95, %s96
      %p110 = scmp.eq.s32.totalorder %s15, 1
      %p111 = por %p109, %p110
      %p113 = scmp.ne.s32.totalorder %s96, %s112
      %p114 = scmp.eq.s32.totalorder %s15, 0
      %p115 = por %p113, %p114
      %p116 = scmp.le.s32.totalorder 1, %s9
      %p117 = scmp.lt.s32.totalorder %s9, 3
      %p118 = pnand %p116, %p117
      %p119 = pneg %p118
      // Predicated region
      $region9: #{decoder_forward.3} parent=5 // pred_check
        _
      $region10: #{decoder_forward.3} parent=5 // pred_check_branch
        %121 = sbr.rel (%p118) target = $region12
      $region11: #{decoder_forward.3} parent=5 // pred_region
        %s122 = ssub.s32 %s9, 1
        // Predicated region
        $region13: #{decoder_forward.3} parent=11 // pred_check
          %p123 = pneg %p30
        $region14: #{decoder_forward.3} parent=11 // pred_check_branch
          %125 = sbr.rel (%p123) target = $region16
        $region15: #{decoder_forward.3} parent=11 // pred_region
          _
        $region16: #{decoder_forward.3} parent=11 // pred_fallthru
          _
      $region12: #{decoder_forward.3} parent=5 // pred_fallthru
        _
      %p126 = scmp.lt.s32.totalorder %s9, 2
      // Predicated region
      $region17: #{decoder_forward.3} parent=5 // pred_check
        %p127 = pneg %p126
      $region18: #{decoder_forward.3} parent=5 // pred_check_branch
        %129 = sbr.rel (%p127) target = $region20
      $region19: #{decoder_forward.3} parent=5 // pred_region
        // Predicated region
        $region21: #{decoder_forward.3} parent=19 // pred_check
          %p130 = pneg %p50
        $region22: #{decoder_forward.3} parent=19 // pred_check_branch
          %132 = sbr.rel (%p130) target = $region24
        $region23: #{decoder_forward.3} parent=19 // pred_region
          %s133 = sand.u32 %s40, 1
          %s134 = sand.u32 %s40, 1
          %s135 = smul.addr %s134, 128
          %s136 = scalar_lea.vmem [#allocation2], %s135
          %s137 = smul.u32 2, %s9
          %s138 = smul.addr %s137, 4
          %s139 = scalar_lea.vmem %s1, %s138
          // Predicated region
          $region25: #{decoder_forward.3} parent=23 // pred_check
            _
          $region26: #{decoder_forward.3} parent=23 // pred_check_branch
            %141 = sbr.rel (0) target = $region28
          $region27: #{decoder_forward.3} parent=23 // pred_region
            // Predicated region
            $region29: #{decoder_forward.3} parent=27 // pred_check
              _
            $region30: #{decoder_forward.3} parent=27 // pred_check_branch
              %143 = sbr.rel (0) target = $region32
            $region31: #{decoder_forward.3} parent=27 // pred_region
              // Predicated region
              $region44: #{decoder_forward.3} parent=31 // pred_check
                _
              $region45: #{decoder_forward.3} parent=31 // pred_check_branch
                %188 = sbr.rel (0) target = $region47
              $region46: #{decoder_forward.3} parent=31 // pred_region
                loop: start=0, step=1, limit=1
                $region48: #{decoder_forward.3} parent=46 // loop_pre_header
                  _
                $region49: #{decoder_forward.3} parent=46 // loop_header
                  %s190 = sphi 0, %s194
                  %p191 = scmp.ge.s32.totalorder %s190, 1
                  %s195 = sphi %s139, %s139
                  %s196 = sphi %s136, %s136
                $region50: #{decoder_forward.3} parent=46 // loop_header_branch
                  %193 = sbr.rel (%p191) target = $region54
                $region51: #{decoder_forward.3} parent=46 // loop_body
                  %v197 = vld [vmem:[%s195] sm:$0xff]
                  %198 = vst [vmem:[%s196] sm:$0xff] %v197
                  %v199 = vld [vmem:[%s195 + $0x10] sm:$0xff]
                  %200 = vst [vmem:[%s196 + $0x8] sm:$0xff] %v199
                  %v201 = vld [vmem:[%s195 + $0x20] sm:$0xff]
                  %202 = vst [vmem:[%s196 + $0x10] sm:$0xff] %v201
                  %v203 = vld [vmem:[%s195 + $0x30] sm:$0xff]
                  %204 = vst [vmem:[%s196 + $0x18] sm:$0xff] %v203
                  %v205 = vld [vmem:[%s195 + $0x40] sm:$0xff]
                  %206 = vst [vmem:[%s196 + $0x20] sm:$0xff] %v205
                  %v207 = vld [vmem:[%s195 + $0x50] sm:$0xff]
                  %208 = vst [vmem:[%s196 + $0x28] sm:$0xff] %v207
                  %v209 = vld [vmem:[%s195 + $0x60] sm:$0xff]
                  %210 = vst [vmem:[%s196 + $0x30] sm:$0xff] %v209
                  %v211 = vld [vmem:[%s195 + $0x70] sm:$0xff]
                  %212 = vst [vmem:[%s196 + $0x38] sm:$0xff] %v211
                  %v213 = vld [vmem:[%s195 + $0x80] sm:$0xff]
                  %214 = vst [vmem:[%s196 + $0x40] sm:$0xff] %v213
                  %v215 = vld [vmem:[%s195 + $0x90] sm:$0xff]
                  %216 = vst [vmem:[%s196 + $0x48] sm:$0xff] %v215
                  %v217 = vld [vmem:[%s195 + $0xa0] sm:$0xff]
                  %218 = vst [vmem:[%s196 + $0x50] sm:$0xff] %v217
                  %v219 = vld [vmem:[%s195 + $0xb0] sm:$0xff]
                  %220 = vst [vmem:[%s196 + $0x58] sm:$0xff] %v219
                  %v221 = vld [vmem:[%s195 + $0xc0] sm:$0xff]
                  %222 = vst [vmem:[%s196 + $0x60] sm:$0xff] %v221
                  %v223 = vld [vmem:[%s195 + $0xd0] sm:$0xff]
                  %224 = vst [vmem:[%s196 + $0x68] sm:$0xff] %v223
                  %v225 = vld [vmem:[%s195 + $0xe0] sm:$0xff]
                  %226 = vst [vmem:[%s196 + $0x70] sm:$0xff] %v225
                  %v227 = vld [vmem:[%s195 + $0xf0] sm:$0xff]
                  %228 = vst [vmem:[%s196 + $0x78] sm:$0xff] %v227
                $region52: #{decoder_forward.3} parent=46 // loop_footer
                  %s194 = sadd.s32 1, %s190
                $region53: #{decoder_forward.3} parent=46 // loop_footer_branch
                  %189 = sbr.rel target = $region49
                $region54: #{decoder_forward.3} parent=46 // loop_exit
                  _
              $region47: #{decoder_forward.3} parent=31 // pred_fallthru
                _
              // Predicated region
              $region55: #{decoder_forward.3} parent=31 // pred_check
                _
              $region56: #{decoder_forward.3} parent=31 // pred_check_branch
                %230 = sbr.rel target = $region58
              $region57: #{decoder_forward.3} parent=31 // pred_region
                _
              $region58: #{decoder_forward.3} parent=31 // pred_fallthru
                _
            $region32: #{decoder_forward.3} parent=27 // pred_fallthru
              _
            // Predicated region
            $region33: #{decoder_forward.3} parent=27 // pred_check
              _
            $region34: #{decoder_forward.3} parent=27 // pred_check_branch
              %145 = sbr.rel target = $region36
            $region35: #{decoder_forward.3} parent=27 // pred_region
              loop: start=0, step=1, limit=1
              $region37: #{decoder_forward.3} parent=35 // loop_pre_header
                _
              $region38: #{decoder_forward.3} parent=35 // loop_header
                %s148 = sphi 0, %s152
                %p149 = scmp.ge.s32.totalorder %s148, 1
                %s153 = sphi %s139, %s139
                %s154 = sphi %s136, %s136
              $region39: #{decoder_forward.3} parent=35 // loop_header_branch
                %151 = sbr.rel (%p149) target = $region43
              $region40: #{decoder_forward.3} parent=35 // loop_body
                %v155 = vld [vmem:[%s153] sm:$0xff]
                %156 = vst [vmem:[%s154] sm:$0xff] %v155
                %v157 = vld [vmem:[%s153 + $0x10] sm:$0xff]
                %158 = vst [vmem:[%s154 + $0x8] sm:$0xff] %v157
                %v159 = vld [vmem:[%s153 + $0x20] sm:$0xff]
                %160 = vst [vmem:[%s154 + $0x10] sm:$0xff] %v159
                %v161 = vld [vmem:[%s153 + $0x30] sm:$0xff]
                %162 = vst [vmem:[%s154 + $0x18] sm:$0xff] %v161
                %v163 = vld [vmem:[%s153 + $0x40] sm:$0xff]
                %164 = vst [vmem:[%s154 + $0x20] sm:$0xff] %v163
                %v165 = vld [vmem:[%s153 + $0x50] sm:$0xff]
                %166 = vst [vmem:[%s154 + $0x28] sm:$0xff] %v165
                %v167 = vld [vmem:[%s153 + $0x60] sm:$0xff]
                %168 = vst [vmem:[%s154 + $0x30] sm:$0xff] %v167
                %v169 = vld [vmem:[%s153 + $0x70] sm:$0xff]
                %170 = vst [vmem:[%s154 + $0x38] sm:$0xff] %v169
                %v171 = vld [vmem:[%s153 + $0x80] sm:$0xff]
                %172 = vst [vmem:[%s154 + $0x40] sm:$0xff] %v171
                %v173 = vld [vmem:[%s153 + $0x90] sm:$0xff]
                %174 = vst [vmem:[%s154 + $0x48] sm:$0xff] %v173
                %v175 = vld [vmem:[%s153 + $0xa0] sm:$0xff]
                %176 = vst [vmem:[%s154 + $0x50] sm:$0xff] %v175
                %v177 = vld [vmem:[%s153 + $0xb0] sm:$0xff]
                %178 = vst [vmem:[%s154 + $0x58] sm:$0xff] %v177
                %v179 = vld [vmem:[%s153 + $0xc0] sm:$0xff]
                %180 = vst [vmem:[%s154 + $0x60] sm:$0xff] %v179
                %v181 = vld [vmem:[%s153 + $0xd0] sm:$0xff]
                %182 = vst [vmem:[%s154 + $0x68] sm:$0xff] %v181
                %v183 = vld [vmem:[%s153 + $0xe0] sm:$0xff]
                %184 = vst [vmem:[%s154 + $0x70] sm:$0xff] %v183
                %v185 = vld [vmem:[%s153 + $0xf0] sm:$0xff]
                %186 = vst [vmem:[%s154 + $0x78] sm:$0xff] %v185
              $region41: #{decoder_forward.3} parent=35 // loop_footer
                %s152 = sadd.s32 1, %s148
              $region42: #{decoder_forward.3} parent=35 // loop_footer_branch
                %147 = sbr.rel target = $region38
              $region43: #{decoder_forward.3} parent=35 // loop_exit
                _
            $region36: #{decoder_forward.3} parent=27 // pred_fallthru
              _
          $region28: #{decoder_forward.3} parent=23 // pred_fallthru
            _
          %231 = vnop
        $region24: #{decoder_forward.3} parent=19 // pred_fallthru
          _
        // Predicated region
        $region59: #{decoder_forward.3} parent=19 // pred_check
          %p232 = pneg %p76
        $region60: #{decoder_forward.3} parent=19 // pred_check_branch
          %234 = sbr.rel (%p232) target = $region62
        $region61: #{decoder_forward.3} parent=19 // pred_region
          %s235 = smul.u32 2, %s9
          %p236 = scmp.lt.s32.totalorder %s235, 3
          %s237 = scalar_select %p236, %s235, 3
          %s238 = scalar_lea.vmem %s2, %s237
          %s239 = smul.u32 2, %s9
        $region62: #{decoder_forward.3} parent=19 // pred_fallthru
          _
      $region20: #{decoder_forward.3} parent=5 // pred_fallthru
        _
      %p240 = scmp.le.s32.totalorder 1, %s9
      %p241 = scmp.lt.s32.totalorder %s9, 3
      %p242 = pnand %p240, %p241
      %p243 = pneg %p242
      // Predicated region
      $region63: #{decoder_forward.3} parent=5 // pred_check
        _
      $region64: #{decoder_forward.3} parent=5 // pred_check_branch
        %245 = sbr.rel (%p242) target = $region66
      $region65: #{decoder_forward.3} parent=5 // pred_region
        %s246 = ssub.s32 %s9, 1
        %s247 = sand.u32 %s43, 1
        %s248 = sand.u32 %s43, 1
        %s249 = smul.addr %s248, 128
        %s250 = scalar_lea.vmem [#allocation2], %s249
        // Predicated region
        $region67: #{decoder_forward.3} parent=65 // pred_check
          %p251 = pneg %p56
        $region68: #{decoder_forward.3} parent=65 // pred_check_branch
          %253 = sbr.rel (%p251) target = $region70
        $region69: #{decoder_forward.3} parent=65 // pred_region
          _
        $region70: #{decoder_forward.3} parent=65 // pred_fallthru
          _
        %p254 = pneg %p30
        %p255 = pneg %p27
        %s256 = sand.u32 %s43, 1
        %s257 = sand.u32 %s43, 1
        %s258 = smul.addr %s257, 128
        %s259 = scalar_lea.vmem [#allocation2], %s258
        %p260 = pneg %p56
        %p261 = pneg %p53
        %s262 = smul.u32 2, %s14
        %p263 = scmp.lt.s32.totalorder %s262, 3
        %s264 = scalar_select %p263, %s262, 3
        %s265 = scalar_lea.vmem %s2, %s264
        %p266 = pneg %p82
        %p267 = pneg %p79
        %p268 = pneg %p108
        %p269 = pneg %p105
        %s270 = smul.u32 2, %s14
        %p271 = scmp.lt.s32.totalorder %s270, 3
        %s272 = scalar_select %p271, %s270, 3
        %s273 = smul.addr %s272, 8
        %s274 = scalar_lea.vmem %s3, %s273
        %s275 = smul.u32 2, %s14
        %s276 = smul.u32 2, %s14
        %p277 = scmp.lt.s32.totalorder %s276, 3
        %s278 = scalar_select %p277, %s276, 3
        %s279 = scalar_lea.vmem %s2, %s278
        %s280 = smul.u32 2, %s14
        %s281 = smul.u32 2, %s14
        %p282 = scmp.lt.s32.totalorder %s281, 3
        %s283 = scalar_select %p282, %s281, 3
        %s284 = smul.addr %s283, 8
        %s285 = scalar_lea.vmem %s3, %s284
        %s286 = smul.u32 2, %s14
        %v288 = vld [vmem:[%s0] sm:$0xf]
        %v289 = vld [vmem:[%s250] sm:$0xff]
        %v290 = vld [vmem:[%s250 + $0x8] sm:$0xff]
        %v291 = vld [vmem:[%s250 + $0x10] sm:$0xff]
        %v292 = vld [vmem:[%s250 + $0x18] sm:$0xff]
        %v293 = vld [vmem:[%s250 + $0x20] sm:$0xff]
        %v294 = vld [vmem:[%s250 + $0x28] sm:$0xff]
        %v295 = vld [vmem:[%s250 + $0x30] sm:$0xff]
        %v296 = vld [vmem:[%s250 + $0x38] sm:$0xff]
        %v297 = vld [vmem:[%s250 + $0x40] sm:$0xff]
        %v298 = vld [vmem:[%s250 + $0x48] sm:$0xff]
        %v299 = vld [vmem:[%s250 + $0x50] sm:$0xff]
        %v300 = vld [vmem:[%s250 + $0x58] sm:$0xff]
        %v301 = vld [vmem:[%s250 + $0x60] sm:$0xff]
        %v302 = vld [vmem:[%s250 + $0x68] sm:$0xff]
        %v303 = vld [vmem:[%s250 + $0x70] sm:$0xff]
        %v304 = vld [vmem:[%s250 + $0x78] sm:$0xff]
        %v305 = vld [vmem:[%s279] sm:$0x3]
        %v307 = vlaneseq
        %v308 = vshrl.u32 %v307, 7
        %v309 = vsub.s32 0, %v308
        %v310 = vrot.slane %v305, %v309
        %v311 = vlaneseq
        %v312 = vshrl.u32 %v311, 7
        %v313 = vsub.s32 1, %v312
        %v314 = vrot.slane %v305, %v313
        %v333 = vunpack.c.l.b16 %v289
        %v334 = vunpack.c.h.b16 %v289
        %v335 = vunpack.c.l.b16 %v290
        %v336 = vunpack.c.h.b16 %v290
        %v337 = vunpack.c.l.b16 %v291
        %v338 = vunpack.c.h.b16 %v291
        %v339 = vunpack.c.l.b16 %v292
        %v340 = vunpack.c.h.b16 %v292
        %v341 = vunpack.c.l.b16 %v293
        %v342 = vunpack.c.h.b16 %v293
        %v343 = vunpack.c.l.b16 %v294
        %v344 = vunpack.c.h.b16 %v294
        %v345 = vunpack.c.l.b16 %v295
        %v346 = vunpack.c.h.b16 %v295
        %v347 = vunpack.c.l.b16 %v296
        %v348 = vunpack.c.h.b16 %v296
        %v349 = vunpack.c.l.b16 %v297
        %v350 = vunpack.c.h.b16 %v297
        %v351 = vunpack.c.l.b16 %v298
        %v352 = vunpack.c.h.b16 %v298
        %v353 = vunpack.c.l.b16 %v299
        %v354 = vunpack.c.h.b16 %v299
        %v355 = vunpack.c.l.b16 %v300
        %v356 = vunpack.c.h.b16 %v300
        %v357 = vunpack.c.l.b16 %v301
        %v358 = vunpack.c.h.b16 %v301
        %v359 = vunpack.c.l.b16 %v302
        %v360 = vunpack.c.h.b16 %v302
        %v361 = vunpack.c.l.b16 %v303
        %v362 = vunpack.c.h.b16 %v303
        %v363 = vunpack.c.l.b16 %v304
        %v364 = vunpack.c.h.b16 %v304
        %v365 = vpack.c.b16 %v335, %v333
        %v366 = vpack.c.b16 %v336, %v334
        %v367 = vpack.c.b16 %v339, %v337
        %v368 = vpack.c.b16 %v340, %v338
        %v369 = vpack.c.b16 %v343, %v341
        %v370 = vpack.c.b16 %v344, %v342
        %v371 = vpack.c.b16 %v347, %v345
        %v372 = vpack.c.b16 %v348, %v346
        %v373 = vpack.c.b16 %v351, %v349
        %v374 = vpack.c.b16 %v352, %v350
        %v375 = vpack.c.b16 %v355, %v353
        %v376 = vpack.c.b16 %v356, %v354
        %v377 = vpack.c.b16 %v359, %v357
        %v378 = vpack.c.b16 %v360, %v358
        %v379 = vpack.c.b16 %v363, %v361
        %v380 = vpack.c.b16 %v364, %v362
        %397 = vmatprep.subr.bf16.mxu0 %v366
        %398 = vmatpush1.bf16.msra.mxu0 %v365
        %399 = vmatprep.subr.bf16.mxu0 %v368
        %400 = vmatpush1.bf16.msra.mxu0 %v367
        %401 = vmatprep.subr.bf16.mxu0 %v370
        %402 = vmatpush1.bf16.msra.mxu0 %v369
        %403 = vmatprep.subr.bf16.mxu0 %v372
        %404 = vmatpush1.bf16.msra.mxu0 %v371
        %405 = vmatprep.subr.bf16.mxu0 %v374
        %406 = vmatpush1.bf16.msra.mxu0 %v373
        %407 = vmatprep.subr.bf16.mxu0 %v376
        %408 = vmatpush1.bf16.msra.mxu0 %v375
        %409 = vmatprep.subr.bf16.mxu0 %v378
        %410 = vmatpush1.bf16.msra.mxu0 %v377
        %411 = vmatprep.subr.bf16.mxu0 %v380
        %412 = vmatpush1.bf16.msra.mxu0 %v379
        %413 = vmatprep.subr.bf16.mxu0 0
        %414 = vmatpush1.bf16.msra.mxu0 0
        %415 = vmatprep.subr.bf16.mxu0 0
        %416 = vmatpush1.bf16.msra.mxu0 0
        %417 = vmatprep.subr.bf16.mxu0 0
        %418 = vmatpush1.bf16.msra.mxu0 0
        %419 = vmatprep.subr.bf16.mxu0 0
        %420 = vmatpush1.bf16.msra.mxu0 0
        %421 = vmatprep.subr.bf16.mxu0 0
        %422 = vmatpush1.bf16.msra.mxu0 0
        %423 = vmatprep.subr.bf16.mxu0 0
        %424 = vmatpush1.bf16.msra.mxu0 0
        %425 = vmatprep.subr.bf16.mxu0 0
        %426 = vmatpush1.bf16.msra.mxu0 0
        %427 = vmatprep.subr.bf16.mxu0 0
        %428 = vmatpush1.bf16.msra.mxu0 0
        %429 = vmatprep.mubr.bf16.mxu0 0
        %430 = vmatmul.mubr.bf16.gmra.mrb[0].mxu0 %v288
        %v431 = vpop.f32.mrb[0].mxu0
        %v432 = vadd.f32 %v310, %v431
        %v433 = vpop.f32.mrb[0].mxu0
        %v434 = vadd.f32 %v314, %v433
        %v435 = vpop.f32.mrb[0].mxu0
        %v436 = vpop.f32.mrb[0].mxu0
        %437 = vdwg.mxu0
        %438 = vst [vmem:[%s285] sm:$0xff] %v432
        %439 = vst [vmem:[%s285 + $0x8] sm:$0xff] %v434
        %s440 = smul.u32 2, %s14
        %p441 = scmp.lt.s32.totalorder %s440, 3
        %s442 = scalar_select %p441, %s440, 3
        %s443 = smul.addr %s442, 8
        %s444 = scalar_lea.vmem %s3, %s443
        // Predicated region
        $region71: #{decoder_forward.3} parent=65 // pred_check
          %p445 = pneg %p105
        $region72: #{decoder_forward.3} parent=65 // pred_check_branch
          %447 = sbr.rel (%p445) target = $region74
        $region73: #{decoder_forward.3} parent=65 // pred_region
          %s448 = smul.u32 2, %s14
        $region74: #{decoder_forward.3} parent=65 // pred_fallthru
          _
      $region66: #{decoder_forward.3} parent=5 // pred_fallthru
        _
      %p449 = scmp.le.s32.totalorder 2, %s9
      // Predicated region
      $region75: #{decoder_forward.3} parent=5 // pred_check
        %p450 = pneg %p449
      $region76: #{decoder_forward.3} parent=5 // pred_check_branch
        %452 = sbr.rel (%p450) target = $region78
      $region77: #{decoder_forward.3} parent=5 // pred_region
        %s453 = ssub.s32 %s9, 2
        // Predicated region
        $region79: #{decoder_forward.3} parent=77 // pred_check
          %p454 = pneg %p111
        $region80: #{decoder_forward.3} parent=77 // pred_check_branch
          %456 = sbr.rel (%p454) target = $region82
        $region81: #{decoder_forward.3} parent=77 // pred_region
          %s457 = smul.u32 2, %s15
          %p458 = scmp.lt.s32.totalorder %s457, 3
          %s459 = scalar_select %p458, %s457, 3
          %s460 = smul.addr %s459, 8
          %s461 = scalar_lea.vmem %s3, %s460
        $region82: #{decoder_forward.3} parent=77 // pred_fallthru
          _
      $region78: #{decoder_forward.3} parent=5 // pred_fallthru
        _
    $region6: #{decoder_forward.3} parent=1 // loop_footer
      %s13 = sadd.s32 1, %s9
    $region7: #{decoder_forward.3} parent=1 // loop_footer_branch
      %8 = sbr.rel target = $region3
    $region8: #{decoder_forward.3} parent=1 // loop_exit
      _

// kernel: decoder_forward.2
$region0: #{decoder_forward.2}
  #allocation0 [shape = 'u32[]', space=smem, size = 0x4, offset = 0x4, fixed_abs, tag = 'smem constant byte address 0x4 - core index']
  #allocation1 [shape = 'u32[144,128]{1,0:T(1,128)}', space=vmem, size = 0x12000, scoped, tag = 'internal scratch']
  %s0 = inlined_call_operand.vmem [shape: f32[2,16], index: 0, kind: input, shape index: {}]
  %s1 = inlined_call_operand.vmem [shape: bf16[2,8,64], index: 1, kind: input, shape index: {}]
  %s2 = inlined_call_operand.vmem [shape: f32[2,2,32], index: 2, kind: input, shape index: {}, may-alias: {2,15}]
  %s3 = inlined_call_operand.vmem [shape: f32[2,2,32], index: 3, kind: input, shape index: {}, may-alias: {3,16}]
  %s4 = inlined_call_operand.vmem [shape: bf16[16,128], index: 4, kind: input, shape index: {}]
  %s5 = inlined_call_operand.vmem [shape: bf16[32,128], index: 5, kind: input, shape index: {}]
  %s6 = inlined_call_operand.vmem [shape: f32[1,128], index: 6, kind: input, shape index: {}]
  %s7 = inlined_call_operand.vmem [shape: bf16[32,128], index: 7, kind: input, shape index: {}]
  %s8 = inlined_call_operand.vmem [shape: bf16[32,128], index: 8, kind: input, shape index: {}]
  %s9 = inlined_call_operand.vmem [shape: f32[1,128], index: 9, kind: input, shape index: {}]
  %s10 = inlined_call_operand.vmem [shape: bf16[32,128], index: 10, kind: input, shape index: {}]
  %s11 = inlined_call_operand.vmem [shape: bf16[64,128], index: 11, kind: input, shape index: {}]
  %s12 = inlined_call_operand.vmem [shape: bf16[1,128], index: 12, kind: input, shape index: {}]
  %s13 = inlined_call_operand.vmem [shape: bf16[2,96], index: 13, kind: output, shape index: {0}]
  %s14 = inlined_call_operand.hbm [shape: f32[2,32], index: 14, kind: output, shape index: {1}]
  %s15 = inlined_call_operand.vmem [shape: f32[2,2,32], index: 15, kind: output, shape index: {2}, may-alias: {2,15}]
  %s16 = inlined_call_operand.vmem [shape: f32[2,2,32], index: 16, kind: output, shape index: {3}, may-alias: {3,16}]
  %s17 = inlined_call_operand.hbm [shape: f32[2,8], index: 17, kind: output, shape index: {4}]
  %s18 = inlined_call_operand.hbm [shape: f32[2,8], index: 18, kind: output, shape index: {5}]
  %19 = xla_tuple %s13, %s14, %s15, %s16, %s17, %s18
  %s20 = sld [smem:[#allocation0]]
  $region102: #{decoder_forward.2} parent=0
    _
  %s22 = ssub.s32 1, %s20
  %s23 = scalar_select 0, %s22, %s20
  $region1: #{decoder_forward.2} parent=0
    #allocation2 [shape = 'u8[1024]{0}', space=vmem, size = 0x400, scoped, tag = 'output window, operand 1, single buffered']
    #allocation3 [shape = 's32[1]{0}', space=sflag, size = 0x4, scoped, tag = 'scoped memory for decoder_forward.2']
    #allocation4 [shape = 'u8[1024]{0}', space=vmem, size = 0x400, scoped, tag = 'output window, operand 4, single buffered']
    #allocation5 [shape = 's32[1]{0}', space=sflag, size = 0x4, scoped, tag = 'scoped memory for decoder_forward.2']
    #allocation6 [shape = 'u8[1024]{0}', space=vmem, size = 0x400, scoped, tag = 'output window, operand 5, single buffered']
    %24 = vsyncpa [#allocation3], 0
    %25 = vsyncpa [#allocation5], 0
    // Predicated region
    $region2: #{decoder_forward.2} parent=1 // pred_check
      _
    $region3: #{decoder_forward.2} parent=1 // pred_check_branch
      %27 = sbr.rel (0) target = $region5
    $region4: #{decoder_forward.2} parent=1 // pred_region
      _
    $region5: #{decoder_forward.2} parent=1 // pred_fallthru
      _
    // Predicated region
    $region6: #{decoder_forward.2} parent=1 // pred_check
      _
    $region7: #{decoder_forward.2} parent=1 // pred_check_branch
      %29 = sbr.rel (0) target = $region9
    $region8: #{decoder_forward.2} parent=1 // pred_region
      _
    $region9: #{decoder_forward.2} parent=1 // pred_fallthru
      _
    // Predicated region
    $region10: #{decoder_forward.2} parent=1 // pred_check
      _
    $region11: #{decoder_forward.2} parent=1 // pred_check_branch
      %31 = sbr.rel (0) target = $region13
    $region12: #{decoder_forward.2} parent=1 // pred_region
      _
    $region13: #{decoder_forward.2} parent=1 // pred_fallthru
      _
    // Predicated region
    $region14: #{decoder_forward.2} parent=1 // pred_check
      _
    $region15: #{decoder_forward.2} parent=1 // pred_check_branch
      %33 = sbr.rel (0) target = $region17
    $region16: #{decoder_forward.2} parent=1 // pred_region
      _
    $region17: #{decoder_forward.2} parent=1 // pred_fallthru
      _
    // Predicated region
    $region18: #{decoder_forward.2} parent=1 // pred_check
      _
    $region19: #{decoder_forward.2} parent=1 // pred_check_branch
      %35 = sbr.rel (0) target = $region21
    $region20: #{decoder_forward.2} parent=1 // pred_region
      _
    $region21: #{decoder_forward.2} parent=1 // pred_fallthru
      _
    // Predicated region
    $region22: #{decoder_forward.2} parent=1 // pred_check
      _
    $region23: #{decoder_forward.2} parent=1 // pred_check_branch
      %37 = sbr.rel (0) target = $region25
    $region24: #{decoder_forward.2} parent=1 // pred_region
      _
    $region25: #{decoder_forward.2} parent=1 // pred_fallthru
      _
    // Predicated region
    $region26: #{decoder_forward.2} parent=1 // pred_check
      _
    $region27: #{decoder_forward.2} parent=1 // pred_check_branch
      %39 = sbr.rel (0) target = $region29
    $region28: #{decoder_forward.2} parent=1 // pred_region
      _
    $region29: #{decoder_forward.2} parent=1 // pred_fallthru
      _
    // Predicated region
    $region30: #{decoder_forward.2} parent=1 // pred_check
      _
    $region31: #{decoder_forward.2} parent=1 // pred_check_branch
      %41 = sbr.rel (0) target = $region33
    $region32: #{decoder_forward.2} parent=1 // pred_region
      _
    $region33: #{decoder_forward.2} parent=1 // pred_fallthru
      _
    // Predicated region
    $region34: #{decoder_forward.2} parent=1 // pred_check
      _
    $region35: #{decoder_forward.2} parent=1 // pred_check_branch
      %43 = sbr.rel (0) target = $region37
    $region36: #{decoder_forward.2} parent=1 // pred_region
      _
    $region37: #{decoder_forward.2} parent=1 // pred_fallthru
      _
    // Predicated region
    $region38: #{decoder_forward.2} parent=1 // pred_check
      _
    $region39: #{decoder_forward.2} parent=1 // pred_check_branch
      %45 = sbr.rel (0) target = $region41
    $region40: #{decoder_forward.2} parent=1 // pred_region
      _
    $region41: #{decoder_forward.2} parent=1 // pred_fallthru
      _
    // Predicated region
    $region42: #{decoder_forward.2} parent=1 // pred_check
      _
    $region43: #{decoder_forward.2} parent=1 // pred_check_branch
      %47 = sbr.rel (0) target = $region45
    $region44: #{decoder_forward.2} parent=1 // pred_region
      _
    $region45: #{decoder_forward.2} parent=1 // pred_fallthru
      _
    // Predicated region
    $region46: #{decoder_forward.2} parent=1 // pred_check
      _
    $region47: #{decoder_forward.2} parent=1 // pred_check_branch
      %49 = sbr.rel (0) target = $region49
    $region48: #{decoder_forward.2} parent=1 // pred_region
      _
    $region49: #{decoder_forward.2} parent=1 // pred_fallthru
      _
    // Predicated region
    $region50: #{decoder_forward.2} parent=1 // pred_check
      _
    $region51: #{decoder_forward.2} parent=1 // pred_check_branch
      %51 = sbr.rel (0) target = $region53
    $region52: #{decoder_forward.2} parent=1 // pred_region
      _
    $region53: #{decoder_forward.2} parent=1 // pred_fallthru
      _
    %v53 = vld [vmem:[%s0] sm:$0x3]
    %v54 = vpack.c.bf16 %v53, %v53
    %v55 = vld [vmem:[%s4] sm:$0xf]
    %v56 = vld [vmem:[%s4 + $0x4] sm:$0xf]
    %v57 = vld [vmem:[%s5] sm:$0xf]
    %v58 = vld [vmem:[%s5 + $0x4] sm:$0xf]
    %v59 = vld [vmem:[%s5 + $0x8] sm:$0xf]
    %v60 = vld [vmem:[%s5 + $0xc] sm:$0xf]
    %v61 = vld [vmem:[%s6] sm:$0x1]
    %v62 = vld [vmem:[%s2] sm:$0x3]
    %v63 = vld [vmem:[%s3] sm:$0x3]
    %v64 = vpack.c.bf16 %v62, %v62
    %v69 = vunpack.c.l.b16 %v57
    %v70 = vunpack.c.l.b16 %v58
    %v71 = vunpack.c.l.b16 %v59
    %v72 = vunpack.c.l.b16 %v60
    %v73 = vpack.c.b16 %v70, %v69
    %v74 = vpack.c.b16 %v72, %v71
    %vm77 = vcmask 261120
    %v79 = vsel %vm77, %v64, 0
    %81 = vmatprep.subr.bf16.mxu0 0
    %82 = vmatpush1.bf16.msra.mxu0 %v73
    %83 = vmatprep.subr.bf16.mxu0 0
    %84 = vmatpush1.bf16.msra.mxu0 %v74
    %85 = vmatprep.subr.bf16.mxu0 0
    %86 = vmatpush1.bf16.msra.mxu0 0
    %87 = vmatprep.subr.bf16.mxu0 0
    %88 = vmatpush1.bf16.msra.mxu0 0
    %89 = vmatprep.subr.bf16.mxu0 0
    %90 = vmatpush1.bf16.msra.mxu0 0
    %91 = vmatprep.subr.bf16.mxu0 0
    %92 = vmatpush1.bf16.msra.mxu0 0
    %93 = vmatprep.subr.bf16.mxu0 0
    %94 = vmatpush1.bf16.msra.mxu0 0
    %95 = vmatprep.subr.bf16.mxu0 0
    %96 = vmatpush1.bf16.msra.mxu0 0
    %97 = vmatprep.subr.bf16.mxu0 0
    %98 = vmatpush1.bf16.msra.mxu0 0
    %99 = vmatprep.subr.bf16.mxu0 0
    %100 = vmatpush1.bf16.msra.mxu0 0
    %101 = vmatprep.subr.bf16.mxu0 0
    %102 = vmatpush1.bf16.msra.mxu0 0
    %103 = vmatprep.subr.bf16.mxu0 0
    %104 = vmatpush1.bf16.msra.mxu0 0
    %105 = vmatprep.subr.bf16.mxu0 0
    %106 = vmatpush1.bf16.msra.mxu0 0
    %107 = vmatprep.subr.bf16.mxu0 0
    %108 = vmatpush1.bf16.msra.mxu0 0
    %109 = vmatprep.subr.bf16.mxu0 0
    %110 = vmatpush1.bf16.msra.mxu0 0
    %111 = vmatprep.subr.bf16.mxu0 0
    %112 = vmatpush1.bf16.msra.mxu0 0
    %113 = vmatprep.mubr.bf16.mxu0 0
    %114 = vmatmul.mubr.bf16.gmra.mrb[0].mxu0 %v79
    %v115 = vpop.f32.mrb[0].mxu0
    %v116 = vadd.f32 0.0, %v115
    %v117 = vpop.f32.mrb[0].mxu0
    %v118 = vpop.f32.mrb[0].mxu0
    %v119 = vpop.f32.mrb[0].mxu0
    %120 = vdwg.mxu0
    %v123 = vunpack.c.l.b16 %v55
    %v124 = vunpack.c.l.b16 %v56
    %v125 = vpack.c.b16 %v124, %v123
    %vm127 = vcmask 130048
    %v129 = vsel %vm127, %v54, 0
    %131 = vmatprep.subr.bf16.mxu0 0
    %132 = vmatpush1.bf16.msra.mxu0 %v125
    %133 = vmatprep.subr.bf16.mxu0 0
    %134 = vmatpush1.bf16.msra.mxu0 0
    %135 = vmatprep.subr.bf16.mxu0 0
    %136 = vmatpush1.bf16.msra.mxu0 0
    %137 = vmatprep.subr.bf16.mxu0 0
    %138 = vmatpush1.bf16.msra.mxu0 0
    %139 = vmatprep.subr.bf16.mxu0 0
    %140 = vmatpush1.bf16.msra.mxu0 0
    %141 = vmatprep.subr.bf16.mxu0 0
    %142 = vmatpush1.bf16.msra.mxu0 0
    %143 = vmatprep.subr.bf16.mxu0 0
    %144 = vmatpush1.bf16.msra.mxu0 0
    %145 = vmatprep.subr.bf16.mxu0 0
    %146 = vmatpush1.bf16.msra.mxu0 0
    %147 = vmatprep.subr.bf16.mxu0 0
    %148 = vmatpush1.bf16.msra.mxu0 0
    %149 = vmatprep.subr.bf16.mxu0 0
    %150 = vmatpush1.bf16.msra.mxu0 0
    %151 = vmatprep.subr.bf16.mxu0 0
    %152 = vmatpush1.bf16.msra.mxu0 0
    %153 = vmatprep.subr.bf16.mxu0 0
    %154 = vmatpush1.bf16.msra.mxu0 0
    %155 = vmatprep.subr.bf16.mxu0 0
    %156 = vmatpush1.bf16.msra.mxu0 0
    %157 = vmatprep.subr.bf16.mxu0 0
    %158 = vmatpush1.bf16.msra.mxu0 0
    %159 = vmatprep.subr.bf16.mxu0 0
    %160 = vmatpush1.bf16.msra.mxu0 0
    %161 = vmatprep.subr.bf16.mxu0 0
    %162 = vmatpush1.bf16.msra.mxu0 0
    %163 = vmatprep.mubr.bf16.mxu0 0
    %164 = vmatmul.mubr.bf16.gmra.mrb[0].mxu0 %v129
    %v165 = vpop.f32.mrb[0].mxu0
    %v166 = vadd.f32 %v116, %v165
    %v167 = vpop.f32.mrb[0].mxu0
    %v168 = vpop.f32.mrb[0].mxu0
    %v169 = vpop.f32.mrb[0].mxu0
    %170 = vdwg.mxu0
    %v172 = vlaneseq
    %v173 = vshrl.u32 %v172, 7
    %v174 = vsub.s32 0, %v173
    %v175 = vrot.slane %v61, %v174
    %v177 = vadd.f32 %v166, %v175
    %v178 = vxor.u32 %v177, 2147483648
    %v179 = vmul.f32 %v178, 1.442695
    %v180 = vpow.pop %v179
    %v181 = vadd.f32 %v180, 1.0
    %v182 = vrcp.pop %v181
    %v183 = vmul.f32 1.0, %v182
    %v184 = vtanh.pop %v177
    %186 = vrot.lane.b32.xlu0 %v63, 32
    %v187 = vpop.permute.xlu0 %186
    %v189 = vmul.f32 %v183, %v187
    %191 = vrot.lane.b32.xlu0 %v184, 64
    %v192 = vpop.permute.xlu0 %191
    %v194 = vmul.f32 %v183, %v192
    %196 = vrot.lane.b32.xlu0 %v194, 32
    %v197 = vpop.permute.xlu0 %196
    %v199 = vadd.f32 %v189, %v197
    %v200 = vtanh.pop %v199
    %202 = vrot.lane.b32.xlu0 %v200, 64
    %v203 = vpop.permute.xlu0 %202
    %v205 = vmul.f32 %v183, %v203
    %207 = vrot.lane.b32.xlu0 %v205, 32
    %v208 = vpop.permute.xlu0 %207
    %vm210 = vcmask 254976
    %211 = vst.msk [vmem:[%s15] sm:$0x3] %vm210, %v208
    %213 = vrot.lane.b32.xlu0 %v199, 96
    %v214 = vpop.permute.xlu0 %213
    %216 = vst.msk [vmem:[%s16] sm:$0x3] %vm210, %v214
    %v217 = vpack.c.bf16 %v205, %v205
    %v218 = vld [vmem:[%s7] sm:$0xf]
    %v219 = vld [vmem:[%s7 + $0x4] sm:$0xf]
    %v220 = vld [vmem:[%s7 + $0x8] sm:$0xf]
    %v221 = vld [vmem:[%s7 + $0xc] sm:$0xf]
    %v222 = vld [vmem:[%s8] sm:$0xf]
    %v223 = vld [vmem:[%s8 + $0x4] sm:$0xf]
    %v224 = vld [vmem:[%s8 + $0x8] sm:$0xf]
    %v225 = vld [vmem:[%s8 + $0xc] sm:$0xf]
    %v226 = vld [vmem:[%s9] sm:$0x1]
    %s227 = scalar_lea.vmem %s2, 2
    %v228 = vld [vmem:[%s227] sm:$0x3]
    %s229 = scalar_lea.vmem %s3, 2
    %v230 = vld [vmem:[%s229] sm:$0x3]
    %v231 = vpack.c.bf16 %v228, %v228
    %v236 = vunpack.c.l.b16 %v222
    %v237 = vunpack.c.l.b16 %v223
    %v238 = vunpack.c.l.b16 %v224
    %v239 = vunpack.c.l.b16 %v225
    %v240 = vpack.c.b16 %v237, %v236
    %v241 = vpack.c.b16 %v239, %v238
    %v245 = vsel %vm77, %v231, 0
    %247 = vmatprep.subr.bf16.mxu0 0
    %248 = vmatpush1.bf16.msra.mxu0 %v240
    %249 = vmatprep.subr.bf16.mxu0 0
    %250 = vmatpush1.bf16.msra.mxu0 %v241
    %251 = vmatprep.subr.bf16.mxu0 0
    %252 = vmatpush1.bf16.msra.mxu0 0
    %253 = vmatprep.subr.bf16.mxu0 0
    %254 = vmatpush1.bf16.msra.mxu0 0
    %255 = vmatprep.subr.bf16.mxu0 0
    %256 = vmatpush1.bf16.msra.mxu0 0
    %257 = vmatprep.subr.bf16.mxu0 0
    %258 = vmatpush1.bf16.msra.mxu0 0
    %259 = vmatprep.subr.bf16.mxu0 0
    %260 = vmatpush1.bf16.msra.mxu0 0
    %261 = vmatprep.subr.bf16.mxu0 0
    %262 = vmatpush1.bf16.msra.mxu0 0
    %263 = vmatprep.subr.bf16.mxu0 0
    %264 = vmatpush1.bf16.msra.mxu0 0
    %265 = vmatprep.subr.bf16.mxu0 0
    %266 = vmatpush1.bf16.msra.mxu0 0
    %267 = vmatprep.subr.bf16.mxu0 0
    %268 = vmatpush1.bf16.msra.mxu0 0
    %269 = vmatprep.subr.bf16.mxu0 0
    %270 = vmatpush1.bf16.msra.mxu0 0
    %271 = vmatprep.subr.bf16.mxu0 0
    %272 = vmatpush1.bf16.msra.mxu0 0
    %273 = vmatprep.subr.bf16.mxu0 0
    %274 = vmatpush1.bf16.msra.mxu0 0
    %275 = vmatprep.subr.bf16.mxu0 0
    %276 = vmatpush1.bf16.msra.mxu0 0
    %277 = vmatprep.subr.bf16.mxu0 0
    %278 = vmatpush1.bf16.msra.mxu0 0
    %279 = vmatprep.mubr.bf16.mxu0 0
    %280 = vmatmul.mubr.bf16.gmra.mrb[0].mxu0 %v245
    %v281 = vpop.f32.mrb[0].mxu0
    %v282 = vadd.f32 0.0, %v281
    %v283 = vpop.f32.mrb[0].mxu0
    %v284 = vpop.f32.mrb[0].mxu0
    %v285 = vpop.f32.mrb[0].mxu0
    %286 = vdwg.mxu0
    %288 = vrot.lane.b32.xlu0 %v217, 32
    %v289 = vpop.permute.xlu0 %288
    %v294 = vunpack.c.l.b16 %v218
    %v295 = vunpack.c.l.b16 %v219
    %v296 = vunpack.c.l.b16 %v220
    %v297 = vunpack.c.l.b16 %v221
    %v298 = vpack.c.b16 %v295, %v294
    %v299 = vpack.c.b16 %v297, %v296
    %v303 = vsel %vm77, %v289, 0
    %305 = vmatprep.subr.bf16.mxu0 0
    %306 = vmatpush1.bf16.msra.mxu0 %v298
    %307 = vmatprep.subr.bf16.mxu0 0
    %308 = vmatpush1.bf16.msra.mxu0 %v299
    %309 = vmatprep.subr.bf16.mxu0 0
    %310 = vmatpush1.bf16.msra.mxu0 0
    %311 = vmatprep.subr.bf16.mxu0 0
    %312 = vmatpush1.bf16.msra.mxu0 0
    %313 = vmatprep.subr.bf16.mxu0 0
    %314 = vmatpush1.bf16.msra.mxu0 0
    %315 = vmatprep.subr.bf16.mxu0 0
    %316 = vmatpush1.bf16.msra.mxu0 0
    %317 = vmatprep.subr.bf16.mxu0 0
    %318 = vmatpush1.bf16.msra.mxu0 0
    %319 = vmatprep.subr.bf16.mxu0 0
    %320 = vmatpush1.bf16.msra.mxu0 0
    %321 = vmatprep.subr.bf16.mxu0 0
    %322 = vmatpush1.bf16.msra.mxu0 0
    %323 = vmatprep.subr.bf16.mxu0 0
    %324 = vmatpush1.bf16.msra.mxu0 0
    %325 = vmatprep.subr.bf16.mxu0 0
    %326 = vmatpush1.bf16.msra.mxu0 0
    %327 = vmatprep.subr.bf16.mxu0 0
    %328 = vmatpush1.bf16.msra.mxu0 0
    %329 = vmatprep.subr.bf16.mxu0 0
    %330 = vmatpush1.bf16.msra.mxu0 0
    %331 = vmatprep.subr.bf16.mxu0 0
    %332 = vmatpush1.bf16.msra.mxu0 0
    %333 = vmatprep.subr.bf16.mxu0 0
    %334 = vmatpush1.bf16.msra.mxu0 0
    %335 = vmatprep.subr.bf16.mxu0 0
    %336 = vmatpush1.bf16.msra.mxu0 0
    %337 = vmatprep.mubr.bf16.mxu0 0
    %338 = vmatmul.mubr.bf16.gmra.mrb[0].mxu0 %v303
    %v339 = vpop.f32.mrb[0].mxu0
    %v340 = vadd.f32 %v282, %v339
    %v341 = vpop.f32.mrb[0].mxu0
    %v342 = vpop.f32.mrb[0].mxu0
    %v343 = vpop.f32.mrb[0].mxu0
    %344 = vdwg.mxu0
    %v346 = vlaneseq
    %v347 = vshrl.u32 %v346, 7
    %v348 = vsub.s32 0, %v347
    %v349 = vrot.slane %v226, %v348
    %v351 = vadd.f32 %v340, %v349
    %v352 = vxor.u32 %v351, 2147483648
    %v353 = vmul.f32 %v352, 1.442695
    %v354 = vpow.pop %v353
    %v355 = vadd.f32 %v354, 1.0
    %v356 = vrcp.pop %v355
    %v357 = vmul.f32 1.0, %v356
    %v358 = vtanh.pop %v351
    %360 = vrot.lane.b32.xlu0 %v230, 32
    %v361 = vpop.permute.xlu0 %360
    %v363 = vmul.f32 %v357, %v361
    %365 = vrot.lane.b32.xlu0 %v358, 64
    %v366 = vpop.permute.xlu0 %365
    %v368 = vmul.f32 %v357, %v366
    %370 = vrot.lane.b32.xlu0 %v368, 32
    %v371 = vpop.permute.xlu0 %370
    %v373 = vadd.f32 %v363, %v371
    %v374 = vtanh.pop %v373
    %376 = vrot.lane.b32.xlu0 %v374, 64
    %v377 = vpop.permute.xlu0 %376
    %v379 = vmul.f32 %v357, %v377
    %381 = vrot.lane.b32.xlu0 %v379, 32
    %v382 = vpop.permute.xlu0 %381
    %s384 = scalar_lea.vmem %s15, 2
    %385 = vst.msk [vmem:[%s384] sm:$0x3] %vm210, %v382
    %387 = vrot.lane.b32.xlu0 %v373, 96
    %v388 = vpop.permute.xlu0 %387
    %s390 = scalar_lea.vmem %s16, 2
    %391 = vst.msk [vmem:[%s390] sm:$0x3] %vm210, %v388
    %392 = vst.msk [vmem:[#allocation2] sm:$0x3] %vm210, %v382
    %v393 = vld [vmem:[%s1] sm:$0xf]
    %v394 = vld [vmem:[%s1 + $0x4] sm:$0xf]
    %v395 = vpack.c.bf16 %v379, %v379
    %v396 = vld [vmem:[%s10] sm:$0xf]
    %v397 = vld [vmem:[%s10 + $0x4] sm:$0xf]
    %v398 = vld [vmem:[%s10 + $0x8] sm:$0xf]
    %v399 = vld [vmem:[%s10 + $0xc] sm:$0xf]
    %401 = vrot.lane.b32.xlu0 %v395, 32
    %v402 = vpop.permute.xlu0 %401
    %v407 = vunpack.c.l.b16 %v396
    %v408 = vunpack.c.l.b16 %v397
    %v409 = vunpack.c.l.b16 %v398
    %v410 = vunpack.c.l.b16 %v399
    %v411 = vpack.c.b16 %v408, %v407
    %v412 = vpack.c.b16 %v410, %v409
    %v416 = vsel %vm77, %v402, 0
    %418 = vmatprep.subr.bf16.mxu0 0
    %419 = vmatpush1.bf16.msra.mxu0 %v411
    %420 = vmatprep.subr.bf16.mxu0 0
    %421 = vmatpush1.bf16.msra.mxu0 %v412
    %422 = vmatprep.subr.bf16.mxu0 0
    %423 = vmatpush1.bf16.msra.mxu0 0
    %424 = vmatprep.subr.bf16.mxu0 0
    %425 = vmatpush1.bf16.msra.mxu0 0
    %426 = vmatprep.subr.bf16.mxu0 0
    %427 = vmatpush1.bf16.msra.mxu0 0
    %428 = vmatprep.subr.bf16.mxu0 0
    %429 = vmatpush1.bf16.msra.mxu0 0
    %430 = vmatprep.subr.bf16.mxu0 0
    %431 = vmatpush1.bf16.msra.mxu0 0
    %432 = vmatprep.subr.bf16.mxu0 0
    %433 = vmatpush1.bf16.msra.mxu0 0
    %434 = vmatprep.subr.bf16.mxu0 0
    %435 = vmatpush1.bf16.msra.mxu0 0
    %436 = vmatprep.subr.bf16.mxu0 0
    %437 = vmatpush1.bf16.msra.mxu0 0
    %438 = vmatprep.subr.bf16.mxu0 0
    %439 = vmatpush1.bf16.msra.mxu0 0
    %440 = vmatprep.subr.bf16.mxu0 0
    %441 = vmatpush1.bf16.msra.mxu0 0
    %442 = vmatprep.subr.bf16.mxu0 0
    %443 = vmatpush1.bf16.msra.mxu0 0
    %444 = vmatprep.subr.bf16.mxu0 0
    %445 = vmatpush1.bf16.msra.mxu0 0
    %446 = vmatprep.subr.bf16.mxu0 0
    %447 = vmatpush1.bf16.msra.mxu0 0
    %448 = vmatprep.subr.bf16.mxu0 0
    %449 = vmatpush1.bf16.msra.mxu0 0
    %450 = vmatprep.mubr.bf16.mxu0 0
    %451 = vmatmul.mubr.bf16.gmra.mrb[0].mxu0 %v416
    %v452 = vpop.f32.mrb[0].mxu0
    %v453 = vadd.f32 0.0, %v452
    %v454 = vpop.f32.mrb[0].mxu0
    %v455 = vpop.f32.mrb[0].mxu0
    %v456 = vpop.f32.mrb[0].mxu0
    %457 = vdwg.mxu0
    %v458 = vld [vmem:[%s11] sm:$0xf]
    %v459 = vld [vmem:[%s11 + $0x4] sm:$0xf]
    %v460 = vld [vmem:[%s11 + $0x8] sm:$0xf]
    %v461 = vld [vmem:[%s11 + $0xc] sm:$0xf]
    %v462 = vld [vmem:[%s11 + $0x10] sm:$0xf]
    %v463 = vld [vmem:[%s11 + $0x14] sm:$0xf]
    %v464 = vld [vmem:[%s11 + $0x18] sm:$0xf]
    %v465 = vld [vmem:[%s11 + $0x1c] sm:$0xf]
    %v468 = vunpack.c.l.b16 %v393
    %v469 = vunpack.c.l.b16 %v394
    %v470 = vpack.c.b16 %v469, %v468
    %v479 = vunpack.c.l.b16 %v458
    %v480 = vunpack.c.l.b16 %v459
    %v481 = vunpack.c.l.b16 %v460
    %v482 = vunpack.c.l.b16 %v461
    %v483 = vunpack.c.l.b16 %v462
    %v484 = vunpack.c.l.b16 %v463
    %v485 = vunpack.c.l.b16 %v464
    %v486 = vunpack.c.l.b16 %v465
    %v487 = vpack.c.b16 %v480, %v479
    %v488 = vpack.c.b16 %v482, %v481
    %v489 = vpack.c.b16 %v484, %v483
    %v490 = vpack.c.b16 %v486, %v485
    %vm495 = vcmask 523264
    %v497 = vsel %vm495, %v470, 0
    %499 = vmatprep.subr.bf16.mxu0 0
    %500 = vmatpush1.bf16.msra.mxu0 %v487
    %501 = vmatprep.subr.bf16.mxu0 0
    %502 = vmatpush1.bf16.msra.mxu0 %v488
    %503 = vmatprep.subr.bf16.mxu0 0
    %504 = vmatpush1.bf16.msra.mxu0 %v489
    %505 = vmatprep.subr.bf16.mxu0 0
    %506 = vmatpush1.bf16.msra.mxu0 %v490
    %507 = vmatprep.subr.bf16.mxu0 0
    %508 = vmatpush1.bf16.msra.mxu0 0
    %509 = vmatprep.subr.bf16.mxu0 0
    %510 = vmatpush1.bf16.msra.mxu0 0
    %511 = vmatprep.subr.bf16.mxu0 0
    %512 = vmatpush1.bf16.msra.mxu0 0
    %513 = vmatprep.subr.bf16.mxu0 0
    %514 = vmatpush1.bf16.msra.mxu0 0
    %515 = vmatprep.subr.bf16.mxu0 0
    %516 = vmatpush1.bf16.msra.mxu0 0
    %517 = vmatprep.subr.bf16.mxu0 0
    %518 = vmatpush1.bf16.msra.mxu0 0
    %519 = vmatprep.subr.bf16.mxu0 0
    %520 = vmatpush1.bf16.msra.mxu0 0
    %521 = vmatprep.subr.bf16.mxu0 0
    %522 = vmatpush1.bf16.msra.mxu0 0
    %523 = vmatprep.subr.bf16.mxu0 0
    %524 = vmatpush1.bf16.msra.mxu0 0
    %525 = vmatprep.subr.bf16.mxu0 0
    %526 = vmatpush1.bf16.msra.mxu0 0
    %527 = vmatprep.subr.bf16.mxu0 0
    %528 = vmatpush1.bf16.msra.mxu0 0
    %529 = vmatprep.subr.bf16.mxu0 0
    %530 = vmatpush1.bf16.msra.mxu0 0
    %531 = vmatprep.mubr.bf16.mxu0 0
    %532 = vmatmul.mubr.bf16.gmra.mrb[0].mxu0 %v497
    %v533 = vpop.f32.mrb[0].mxu0
    %v534 = vadd.f32 0.0, %v533
    %v535 = vpop.f32.mrb[0].mxu0
    %v536 = vpop.f32.mrb[0].mxu0
    %v537 = vadd.f32 0.0, %v536
    %v538 = vpop.f32.mrb[0].mxu0
    %539 = vdwg.mxu0
    %v540 = vld [vmem:[%s12] sm:$0x1]
    %v541 = vunpack.c.l.bf16 %v540
    %v544 = vunpack.c.l.s4 1966171168
    %v545 = vunpack.c.0.s8 %v544
    %v546 = vlaneseq
    %v547 = vshrl.u32 %v546, 7
    %v548 = vsub.s32 %v545, %v547
    %v549 = vrot.slane %v453, %v548
    %v550 = vcombine.high %v549, %v549
    %v552 = vunpack.c.l.s4 1966171168
    %v553 = vunpack.c.0.s8 %v552
    %v554 = vlaneseq
    %v555 = vshrl.u32 %v554, 7
    %v556 = vsub.s32 %v553, %v555
    %v557 = vrot.slane %v549, %v556
    %v559 = vunpack.c.l.s4 1966171168
    %v560 = vunpack.c.0.s8 %v559
    %v561 = vlaneseq
    %v562 = vshrl.u32 %v561, 7
    %v563 = vsub.s32 %v560, %v562
    %v564 = vrot.slane %v550, %v563
    %v565 = vlaneseq
    %v566 = vshrl.u32 %v565, 7
    %v567 = vsub.s32 0, %v566
    %v568 = vrot.slane %v557, %v567
    %v569 = vlaneseq
    %v570 = vshrl.u32 %v569, 7
    %v571 = vsub.s32 0, %v570
    %v572 = vrot.slane %v564, %v571
    %v575 = vadd.f32 %v534, %v568
    %v576 = vadd.f32 %v537, %v572
    %v577 = vtanh.pop %v575
    %v578 = vtanh.pop %v576
    %v579 = vlaneseq
    %v580 = vshrl.u32 %v579, 7
    %v581 = vsub.s32 0, %v580
    %v582 = vrot.slane %v541, %v581
    %v583 = vmul.f32 %v577, %v582
    %v584 = vmul.f32 %v578, %v582
    %585 = vadd.xlane.f32.xlu0 %v583
    %v586 = vpop.xlane.xlu0 %585
    %587 = vadd.xlane.f32.xlu0 %v584
    %v588 = vpop.xlane.xlu0 %587
    %v591 = vlaneseq
    %v592 = vand.u32 %v591, 127
    %v593 = vlaneseq
    %v594 = vshrl.u32 %v593, 7
    %v595 = vsub.s32 %v592, %v594
    %v596 = vrot.slane %v586, %v595
    %v597 = vlaneseq
    %v598 = vshrl.u32 %v597, 7
    %v599 = vsub.s32 %v592, %v598
    %v600 = vrot.slane %v588, %v599
    %vm601 = vcmask 1041409
    %v602 = vsel %vm601, %v600, %v596
    %vm604 = vcmask 58368
    %605 = vst.msk [vmem:[#allocation6] sm:$0x3] %vm604, %v602
    %v606 = vsel %vm604, %v602, -inf
    %607 = vmax.xlane.f32.xlu0 %v606
    %v608 = vpop.xlane.xlu0 %607
    %v610 = vlaneseq
    %v611 = vshrl.u32 %v610, 7
    %v612 = vsub.s32 0, %v611
    %v613 = vrot.slane %v608, %v612
    %v614 = vlaneseq
    %v615 = vshrl.u32 %v614, 7
    %v616 = vsub.s32 1, %v615
    %v617 = vrot.slane %v608, %v616
    %v620 = vsub.f32 %v586, %v613
    %v621 = vsub.f32 %v588, %v617
    %v622 = vmul.f32 %v620, 1.442695
    %v623 = vpow.pop %v622
    %v624 = vmul.f32 %v621, 1.442695
    %v625 = vpow.pop %v624
    %628 = vset.pattern.permute.xlu0 0
    %629 = vperm.xlu0 %628, %v623
    %v630 = vpop.permute.xlu0 %629
    %631 = vset.pattern.permute.xlu0 0
    %632 = vperm.xlu0 %631, %v625
    %v633 = vpop.permute.xlu0 %632
    %v634 = vlaneseq
    %v635 = vshrl.u32 %v634, 7
    %v636 = vsub.s32 %v592, %v635
    %v637 = vrot.slane %v630, %v636
    %v638 = vlaneseq
    %v639 = vshrl.u32 %v638, 7
    %v640 = vsub.s32 %v592, %v639
    %v641 = vrot.slane %v633, %v640
    %v642 = vsel %vm601, %v641, %v637
    %v644 = vsel %vm604, %v642, 0.0
    %645 = vadd.xlane.f32.xlu0 %v644
    %v646 = vpop.xlane.xlu0 %645
    %v648 = vlaneseq
    %v649 = vshrl.u32 %v648, 7
    %v650 = vsub.s32 0, %v649
    %v651 = vrot.slane %v646, %v650
    %v652 = vlaneseq
    %v653 = vshrl.u32 %v652, 7
    %v654 = vsub.s32 1, %v653
    %v655 = vrot.slane %v646, %v654
    %v658 = vrcp.pop %v651
    %v659 = vmul.f32 %v623, %v658
    %v660 = vrcp.pop %v655
    %v661 = vmul.f32 %v625, %v660
    %664 = vset.pattern.permute.xlu0 0
    %665 = vperm.xlu0 %664, %v659
    %v666 = vpop.permute.xlu0 %665
    %667 = vset.pattern.permute.xlu0 0
    %668 = vperm.xlu0 %667, %v661
    %v669 = vpop.permute.xlu0 %668
    %v670 = vlaneseq
    %v671 = vshrl.u32 %v670, 7
    %v672 = vsub.s32 %v592, %v671
    %v673 = vrot.slane %v666, %v672
    %v674 = vlaneseq
    %v675 = vshrl.u32 %v674, 7
    %v676 = vsub.s32 %v592, %v675
    %v677 = vrot.slane %v669, %v676
    %v678 = vsel %vm601, %v677, %v673
    %680 = vst.msk [vmem:[#allocation4] sm:$0x3] %vm604, %v678
    %v681 = vpack.c.bf16 %v659, %v659
    %v682 = vpack.c.bf16 %v661, %v661
    %v684 = vunpack.c.l.b16 %v681
    %685 = vset.pattern.permute.xlu0 0
    %686 = vperm.xlu0 %685, %v684
    %v687 = vpop.permute.xlu0 %686
    %v688 = vlaneseq
    %v689 = vshrl.u32 %v688, 7
    %v690 = vsub.s32 %v592, %v689
    %v691 = vrot.slane %v687, %v690
    %v692 = vpack.c.b16 %v691, %v691
    %vm693 = vcmask 64512
    %v695 = vsel %vm693, %v692, 0
    %vm697 = vcmask 1043456
    %v699 = vsel %vm697, %v393, 0
    %701 = vmatprep.subr.bf16.mxu0 0
    %702 = vmatpush1.bf16.msra.mxu0 %v699
    %703 = vmatprep.subr.bf16.mxu0 0
    %704 = vmatpush1.bf16.msra.mxu0 0
    %705 = vmatprep.subr.bf16.mxu0 0
    %706 = vmatpush1.bf16.msra.mxu0 0
    %707 = vmatprep.subr.bf16.mxu0 0
    %708 = vmatpush1.bf16.msra.mxu0 0
    %709 = vmatprep.subr.bf16.mxu0 0
    %710 = vmatpush1.bf16.msra.mxu0 0
    %711 = vmatprep.subr.bf16.mxu0 0
    %712 = vmatpush1.bf16.msra.mxu0 0
    %713 = vmatprep.subr.bf16.mxu0 0
    %714 = vmatpush1.bf16.msra.mxu0 0
    %715 = vmatprep.subr.bf16.mxu0 0
    %716 = vmatpush1.bf16.msra.mxu0 0
    %717 = vmatprep.subr.bf16.mxu0 0
    %718 = vmatpush1.bf16.msra.mxu0 0
    %719 = vmatprep.subr.bf16.mxu0 0
    %720 = vmatpush1.bf16.msra.mxu0 0
    %721 = vmatprep.subr.bf16.mxu0 0
    %722 = vmatpush1.bf16.msra.mxu0 0
    %723 = vmatprep.subr.bf16.mxu0 0
    %724 = vmatpush1.bf16.msra.mxu0 0
    %725 = vmatprep.subr.bf16.mxu0 0
    %726 = vmatpush1.bf16.msra.mxu0 0
    %727 = vmatprep.subr.bf16.mxu0 0
    %728 = vmatpush1.bf16.msra.mxu0 0
    %729 = vmatprep.subr.bf16.mxu0 0
    %730 = vmatpush1.bf16.msra.mxu0 0
    %731 = vmatprep.subr.bf16.mxu0 0
    %732 = vmatpush1.bf16.msra.mxu0 0
    %733 = vmatprep.mubr.bf16.mxu0 0
    %734 = vmatmul.mubr.bf16.gmra.mrb[0].mxu0 %v695
    %v735 = vpop.f32.mrb[0].mxu0
    %v736 = vadd.f32 0.0, %v735
    %v737 = vpop.f32.mrb[0].mxu0
    %v738 = vpop.f32.mrb[0].mxu0
    %v739 = vpop.f32.mrb[0].mxu0
    %740 = vdwg.mxu0
    %v742 = vunpack.c.l.b16 %v682
    %743 = vset.pattern.permute.xlu0 0
    %744 = vperm.xlu0 %743, %v742
    %v745 = vpop.permute.xlu0 %744
    %v746 = vlaneseq
    %v747 = vshrl.u32 %v746, 7
    %v748 = vsub.s32 %v592, %v747
    %v749 = vrot.slane %v745, %v748
    %v750 = vpack.c.b16 %v749, %v749
    %v752 = vsel %vm693, %v750, 0
    %v755 = vsel %vm697, %v394, 0
    %757 = vmatprep.subr.bf16.mxu0 0
    %758 = vmatpush1.bf16.msra.mxu0 %v755
    %759 = vmatprep.subr.bf16.mxu0 0
    %760 = vmatpush1.bf16.msra.mxu0 0
    %761 = vmatprep.subr.bf16.mxu0 0
    %762 = vmatpush1.bf16.msra.mxu0 0
    %763 = vmatprep.subr.bf16.mxu0 0
    %764 = vmatpush1.bf16.msra.mxu0 0
    %765 = vmatprep.subr.bf16.mxu0 0
    %766 = vmatpush1.bf16.msra.mxu0 0
    %767 = vmatprep.subr.bf16.mxu0 0
    %768 = vmatpush1.bf16.msra.mxu0 0
    %769 = vmatprep.subr.bf16.mxu0 0
    %770 = vmatpush1.bf16.msra.mxu0 0
    %771 = vmatprep.subr.bf16.mxu0 0
    %772 = vmatpush1.bf16.msra.mxu0 0
    %773 = vmatprep.subr.bf16.mxu0 0
    %774 = vmatpush1.bf16.msra.mxu0 0
    %775 = vmatprep.subr.bf16.mxu0 0
    %776 = vmatpush1.bf16.msra.mxu0 0
    %777 = vmatprep.subr.bf16.mxu0 0
    %778 = vmatpush1.bf16.msra.mxu0 0
    %779 = vmatprep.subr.bf16.mxu0 0
    %780 = vmatpush1.bf16.msra.mxu0 0
    %781 = vmatprep.subr.bf16.mxu0 0
    %782 = vmatpush1.bf16.msra.mxu0 0
    %783 = vmatprep.subr.bf16.mxu0 0
    %784 = vmatpush1.bf16.msra.mxu0 0
    %785 = vmatprep.subr.bf16.mxu0 0
    %786 = vmatpush1.bf16.msra.mxu0 0
    %787 = vmatprep.subr.bf16.mxu0 0
    %788 = vmatpush1.bf16.msra.mxu0 0
    %789 = vmatprep.mubr.bf16.mxu0 0
    %790 = vmatmul.mubr.bf16.gmra.mrb[0].mxu0 %v752
    %v791 = vpop.f32.mrb[0].mxu0
    %v792 = vadd.f32 0.0, %v791
    %v793 = vpop.f32.mrb[0].mxu0
    %v794 = vpop.f32.mrb[0].mxu0
    %v795 = vpop.f32.mrb[0].mxu0
    %796 = vdwg.mxu0
    %v799 = vrot.slane %v792, 7
    %v800 = vsel %vm601, %v799, %v736
    %801 = vrot.lane.b32.xlu0 %v800, 32
    %v802 = vpop.permute.xlu0 %801
    %v804 = vsel %vm77, %v382, %v802
    %v805 = vpack.c.bf16 %v804, %v804
    %vm806 = vcmask 778240
    %807 = vst.msk [vmem:[%s13] sm:$0x1] %vm806, %v805
    // Predicated region
    $region54: #{decoder_forward.2} parent=1 // pred_check
      _
    $region55: #{decoder_forward.2} parent=1 // pred_check_branch
      %809 = sbr.rel (0) target = $region57
    $region56: #{decoder_forward.2} parent=1 // pred_region
      _
    $region57: #{decoder_forward.2} parent=1 // pred_fallthru
      _
    // Predicated region
    $region58: #{decoder_forward.2} parent=1 // pred_check
      _
    $region59: #{decoder_forward.2} parent=1 // pred_check_branch
      %811 = sbr.rel (0) target = $region61
    $region60: #{decoder_forward.2} parent=1 // pred_region
      %s813 = ssub.s32 32, 32
      %814 = vsyncadd [#allocation3], %s813
      %s816 = sshll.u32 [#allocation2], 4
      %s817 = int_to_ptr.vmem [resolvable:$true] %s816
      %819 = dma.vmem_to_hbm [thread:$0]  %s817, 32, %s14, [#allocation3]
    $region61: #{decoder_forward.2} parent=1 // pred_fallthru
      _
    // Predicated region
    $region62: #{decoder_forward.2} parent=1 // pred_check
      _
    $region63: #{decoder_forward.2} parent=1 // pred_check_branch
      %821 = sbr.rel (0) target = $region65
    $region64: #{decoder_forward.2} parent=1 // pred_region
      _
    $region65: #{decoder_forward.2} parent=1 // pred_fallthru
      _
    // Predicated region
    $region66: #{decoder_forward.2} parent=1 // pred_check
      _
    $region67: #{decoder_forward.2} parent=1 // pred_check_branch
      %823 = sbr.rel (0) target = $region69
    $region68: #{decoder_forward.2} parent=1 // pred_region
      _
    $region69: #{decoder_forward.2} parent=1 // pred_fallthru
      _
    // Predicated region
    $region70: #{decoder_forward.2} parent=1 // pred_check
      _
    $region71: #{decoder_forward.2} parent=1 // pred_check_branch
      %825 = sbr.rel (0) target = $region73
    $region72: #{decoder_forward.2} parent=1 // pred_region
      %s827 = ssub.s32 32, 32
      %828 = vsyncadd [#allocation5], %s827
      %s830 = sshll.u32 [#allocation4], 4
      %s831 = int_to_ptr.vmem [resolvable:$true] %s830
      %833 = dma.vmem_to_hbm [thread:$0]  %s831, 32, %s17, [#allocation5]
    $region73: #{decoder_forward.2} parent=1 // pred_fallthru
      _
    // Predicated region
    $region74: #{decoder_forward.2} parent=1 // pred_check
      _
    $region75: #{decoder_forward.2} parent=1 // pred_check_branch
      %835 = sbr.rel (0) target = $region77
    $region76: #{decoder_forward.2} parent=1 // pred_region
      %s837 = ssub.s32 32, 32
      %838 = vsyncadd [#allocation5], %s837
      %s840 = sshll.u32 [#allocation6], 4
      %s841 = int_to_ptr.vmem [resolvable:$true] %s840
      %843 = dma.vmem_to_hbm [thread:$0]  %s841, 32, %s18, [#allocation5]
    $region77: #{decoder_forward.2} parent=1 // pred_fallthru
      _
    // Predicated region
    $region78: #{decoder_forward.2} parent=1 // pred_check
      _
    $region79: #{decoder_forward.2} parent=1 // pred_check_branch
      %845 = sbr.rel (0) target = $region81
    $region80: #{decoder_forward.2} parent=1 // pred_region
      _
    $region81: #{decoder_forward.2} parent=1 // pred_fallthru
      _
    // Predicated region
    $region82: #{decoder_forward.2} parent=1 // pred_check
      _
    $region83: #{decoder_forward.2} parent=1 // pred_check_branch
      %847 = sbr.rel (0) target = $region85
    $region84: #{decoder_forward.2} parent=1 // pred_region
      %848 = dma.done [#allocation3], 32
    $region85: #{decoder_forward.2} parent=1 // pred_fallthru
      _
    // Predicated region
    $region86: #{decoder_forward.2} parent=1 // pred_check
      _
    $region87: #{decoder_forward.2} parent=1 // pred_check_branch
      %850 = sbr.rel (0) target = $region89
    $region88: #{decoder_forward.2} parent=1 // pred_region
      _
    $region89: #{decoder_forward.2} parent=1 // pred_fallthru
      _
    // Predicated region
    $region90: #{decoder_forward.2} parent=1 // pred_check
      _
    $region91: #{decoder_forward.2} parent=1 // pred_check_branch
      %852 = sbr.rel (0) target = $region93
    $region92: #{decoder_forward.2} parent=1 // pred_region
      _
    $region93: #{decoder_forward.2} parent=1 // pred_fallthru
      _
    // Predicated region
    $region94: #{decoder_forward.2} parent=1 // pred_check
      _
    $region95: #{decoder_forward.2} parent=1 // pred_check_branch
      %854 = sbr.rel (0) target = $region97
    $region96: #{decoder_forward.2} parent=1 // pred_region
      %855 = dma.done [#allocation5], 32
    $region97: #{decoder_forward.2} parent=1 // pred_fallthru
      _
    // Predicated region
    $region98: #{decoder_forward.2} parent=1 // pred_check
      _
    $region99: #{decoder_forward.2} parent=1 // pred_check_branch
      %857 = sbr.rel (0) target = $region101
    $region100: #{decoder_forward.2} parent=1 // pred_region
      %858 = dma.done [#allocation5], 32
    $region101: #{decoder_forward.2} parent=1 // pred_fallthru
      _
    %859 = vsyncpa [#allocation3], 1
    %860 = vsyncpa [#allocation5], 1

</llo_original>
